<compile_context>
chip_gen: v5e
topology: v5e:2x2
jax: 0.10.0
libtpu: 0.0.40
codegen_flags: <defaults>
</compile_context>

<pallas_src>
import functools

import jax
import jax.numpy as jnp
from jax.experimental import pallas as pl
from jax.experimental.pallas import tpu as pltpu

# ----- hyper-parameters (the undefined globals of the original PyTorch file) -----
EMBEDDING_LENGTH = 16
LSTM_HIDDEN_SIZE = 32
SENTENCE_MAX_LENGTH = 16                               # multiple of 8 (three /2 max-pools)
CNN_FEATURE_SIZE = 16 * (SENTENCE_MAX_LENGTH // 8)     # conv4 channels * final length = 32
SEQ_LEN = 8                                            # inputs.size(0)
BATCH = 4                                              # sentences per pallas_call

assert SENTENCE_MAX_LENGTH % 8 == 0, "three stride-2 max-pools require L % 8 == 0"

E = EMBEDDING_LENGTH
H = LSTM_HIDDEN_SIZE
L = SENTENCE_MAX_LENGTH
L2, L4, L8 = L // 2, L // 4, L // 8

# ---- static row offsets inside the packed weight slabs ----
# 256-lane bf16 conv slab: [conv1 im2col (K padded to 128) | conv3 im2col | conv4^T]
_W1_R0, _W1_R1 = 0, 128                          # (128, 256)  (rows 112..127 zero)
_W3_R0, _W3_R1 = _W1_R1, _W1_R1 + 3 * 64         # (192, 256)
_W4_R0, _W4_R1 = _W3_R1, _W3_R1 + 16             # (16, 256)   conv4 weight, transposed
_CONV_ROWS = _W4_R1                              # 336
# 128-lane bf16 LSTM/fc slab: [W_ih^T (K padded to 128) | W_hh^T | fc1_h^T | fc1_c | fc2]
_WIH_R0, _WIH_R1 = 0, 128                        # (128, 128) (rows E..127 zero)
_WHH_R0, _WHH_R1 = _WIH_R1, _WIH_R1 + H          # (32, 128)
_WF1H_R0, _WF1H_R1 = _WHH_R1, _WHH_R1 + H        # (32, 128)
_WF1C_R0, _WF1C_R1 = _WF1H_R1, _WF1H_R1 + CNN_FEATURE_SIZE   # (32, 128)
_WF2_R0, _WF2_R1 = _WF1C_R1, _WF1C_R1 + 32       # (32, 128)   fc2 weight, transposed
_SLAB_ROWS = _WF2_R1                             # 256


def _sa_net_kernel(seq, x_ref, convw_ref, w2_ref, slab_ref, misc_ref, out_ref):
    f32, bf16 = jnp.float32, jnp.bfloat16

    x = x_ref[0]                                 # (rows, 128) bf16, this sentence only

    # ---- unpack resident packed parameters (static slices, no extra DMAs) ----
    w1 = convw_ref[_W1_R0:_W1_R1, :]             # (128, 256) bf16
    w3 = convw_ref[_W3_R0:_W3_R1, :]             # (192, 256) bf16
    w4t = convw_ref[_W4_R0:_W4_R1, :]            # (16, 256)  bf16 (transposed conv4)
    wih = slab_ref[_WIH_R0:_WIH_R1, :]           # (128, 128) bf16
    whh = slab_ref[_WHH_R0:_WHH_R1, :]           # (32, 128)  bf16
    wf1h = slab_ref[_WF1H_R0:_WF1H_R1, :]        # (32, 128)  bf16
    wf1c = slab_ref[_WF1C_R0:_WF1C_R1, :]        # (32, 128)  bf16 (position-major fc1 cols)
    wf2t = slab_ref[_WF2_R0:_WF2_R1, :]          # (32, 128)  bf16 (transposed fc2)

    b1 = misc_ref[0:1, 0:256]                    # f32 biases / small params
    b2 = misc_ref[1:2, 0:64]
    b3 = misc_ref[2:3, 0:256]
    b4 = misc_ref[3:4, 0:16]
    blstm = misc_ref[4:5, 0:4 * H]
    bf1 = misc_ref[5:6, 0:128]
    bf2 = misc_ref[6:7, 0:32]
    wf3 = misc_ref[7:8, 0:32]
    bf3 = misc_ref[7:8, 32:33]

    def tdot(a, b):                              # A @ B^T (contract both lane axes)
        return jax.lax.dot_general(a, b, (((1,), (1,)), ((), ())),
                                   preferred_element_type=f32)

    # ---------------- LSTMCell over the sequence (batch=1), torch gate order i,f,g,o
    x_lstm = x[L:L + seq, :]                                            # (seq, 128) bf16
    xg = jnp.dot(x_lstm, wih, preferred_element_type=f32) + blstm       # (seq, 4H) f32
    hx = jnp.zeros((1, H), f32)
    cx = jnp.zeros((1, H), f32)
    hsum = jnp.zeros((1, H), f32)
    for t in range(seq):                         # static & small -> unrolled
        gates = xg[t:t + 1, :] + jnp.dot(hx.astype(bf16), whh,
                                         preferred_element_type=f32)    # (1, 4H)
        sg = jax.nn.sigmoid(gates)               # full-width EUP ops, slice afterwards
        tg = jnp.tanh(gates)
        cx = sg[:, H:2 * H] * cx + sg[:, 0:H] * tg[:, 2 * H:3 * H]
        hx = sg[:, 3 * H:4 * H] * jnp.tanh(cx)
        hsum = hsum + hx
    hx_mean = hsum * (1.0 / seq)                                        # (1, H)

    # ---------------- CNN tower: one im2col matmul per conv layer, f32 elementwise
    def pool_pairs(a):                           # tiny (<=8 rows) pairwise max-pool
        n = a.shape[0]
        return jnp.concatenate(
            [jnp.maximum(a[2 * i:2 * i + 1, :], a[2 * i + 1:2 * i + 2, :])
             for i in range(n // 2)], axis=0)

    # conv1: wrapper-built im2col (K padded to 128); rows permuted "even positions
    # first" so the first max-pool is just max(top half, bottom half).
    c1 = jnp.dot(x[0:L, :], w1, preferred_element_type=f32) + b1        # (16, 256)
    a1 = jax.nn.sigmoid(jnp.maximum(c1[0:L2, :], c1[L2:L, :]))          # (8, 256)

    # conv2: k=5, pad=2 -> single dot with K = 5*256 = 1280 (bf16 im2col operand)
    zp2 = jnp.zeros((2, 256), f32)
    ap2 = jnp.concatenate([zp2, a1, zp2], axis=0)                       # (12, 256)
    im2 = jnp.concatenate([ap2[k:k + L2, :].astype(bf16) for k in range(5)],
                          axis=1)                                       # (8, 1280) bf16
    c2 = jnp.dot(im2, w2_ref[...], preferred_element_type=f32) + b2     # (8, 64)
    a2 = jax.nn.sigmoid(pool_pairs(c2))                                 # (4, 64)

    # conv3: k=3, pad=1 -> single dot with K = 3*64 = 192 (bf16 im2col operand)
    zp3 = jnp.zeros((1, 64), f32)
    ap3 = jnp.concatenate([zp3, a2, zp3], axis=0)                       # (6, 64)
    im3 = jnp.concatenate([ap3[k:k + L4, :].astype(bf16) for k in range(3)],
                          axis=1)                                       # (4, 192) bf16
    c3 = jnp.dot(im3, w3, preferred_element_type=f32) + b3              # (4, 256)
    a3 = jax.nn.sigmoid(pool_pairs(c3))                                 # (2, 256)

    # conv4 (1x1): a3 @ W4^T with W4 stored transposed as (16, 256)
    a4 = jax.nn.sigmoid(tdot(a3.astype(bf16), w4t) + b4)                # (2, 16)

    # ---------------- fc head; concat([hx_mean, flatten(a4)]) as accumulating dots
    f1p = jnp.dot(hx_mean.astype(bf16), wf1h, preferred_element_type=f32) + bf1
    for pos in range(L8):                        # per conv4 row, no lane-concat needed
        f1p = f1p + jnp.dot(a4[pos:pos + 1, :].astype(bf16),
                            wf1c[16 * pos:16 * (pos + 1), :],
                            preferred_element_type=f32)
    f1 = jax.nn.sigmoid(f1p)                                            # (1, 128)
    f2 = jax.nn.sigmoid(tdot(f1.astype(bf16), wf2t) + bf2)              # (1, 32)
    # fc3 on the VPU/XLU: multiply + 32-lane reduce instead of an MXU round-trip
    y = jax.nn.sigmoid(jnp.sum(f2 * wf3, axis=1, keepdims=True) + bf3)  # (1, 1)
    out_ref[0] = jnp.broadcast_to(y, (1, 128))   # lane-dense store; lane 0 is the result


def init_params(key):
    """Deterministic synthetic parameters with the exact shapes of SA_NET.__init__."""
    ks = jax.random.split(key, 10)

    def w(k, shape, fan_in):
        return jax.random.normal(k, shape, jnp.float32) * (float(fan_in) ** -0.5)

    p = {}
    p["conv1_w"] = w(ks[0], (256, 1, 7, E), 7 * E)
    p["conv1_b"] = jnp.zeros((256,), jnp.float32)
    p["conv2_w"] = w(ks[1], (64, 256, 5), 5 * 256)
    p["conv2_b"] = jnp.zeros((64,), jnp.float32)
    p["conv3_w"] = w(ks[2], (256, 64, 3), 3 * 64)
    p["conv3_b"] = jnp.zeros((256,), jnp.float32)
    p["conv4_w"] = w(ks[3], (16, 256, 1), 256)
    p["conv4_b"] = jnp.zeros((16,), jnp.float32)
    p["lstm_w_ih"] = w(ks[4], (4 * H, E), E)
    p["lstm_w_hh"] = w(ks[5], (4 * H, H), H)
    p["lstm_b_ih"] = jnp.zeros((4 * H,), jnp.float32)
    p["lstm_b_hh"] = jnp.zeros((4 * H,), jnp.float32)
    p["fc1_w"] = w(ks[6], (128, H + CNN_FEATURE_SIZE), H + CNN_FEATURE_SIZE)
    p["fc1_b"] = jnp.zeros((128,), jnp.float32)
    p["fc2_w"] = w(ks[7], (32, 128), 128)
    p["fc2_b"] = jnp.zeros((32,), jnp.float32)
    p["fc3_w"] = w(ks[8], (1, 32), 32)
    p["fc3_b"] = jnp.zeros((1,), jnp.float32)
    return p


def rearrange_params(p):
    """Pack PyTorch-layout weights into 4 kernel-ready slabs (bf16 matmul operands)."""
    bf16, f32 = jnp.bfloat16, jnp.float32

    # conv weights as im2col matmul operands: w[k*Cin + c, o] = torch_w[o, c, k]
    w1 = jnp.transpose(p["conv1_w"][:, 0], (1, 2, 0)).reshape(7 * E, 256)      # (112, 256)
    w1p = jnp.zeros((128, 256), f32).at[:7 * E, :].set(w1)                     # K -> 128
    w2 = jnp.transpose(p["conv2_w"], (2, 1, 0)).reshape(5 * 256, 64)           # (1280, 64)
    w3 = jnp.transpose(p["conv3_w"], (2, 1, 0)).reshape(3 * 64, 256)           # (192, 256)
    w4t = p["conv4_w"][:, :, 0]                                                # (16, 256)
    conv256 = jnp.concatenate([w1p, w3, w4t], axis=0).astype(bf16)             # (336, 256)

    # 128-lane slab: LSTM + fc weights
    wih = jnp.zeros((128, 128), f32).at[:E, :].set(p["lstm_w_ih"].T)           # K -> 128
    whh = p["lstm_w_hh"].T                                                     # (32, 128)
    wf1h = p["fc1_w"][:, :H].T                                                 # (32, 128)
    # fc1 CNN part: reorder rows so row = pos*16 + channel (matches a4 row/lane layout;
    # torch's channel-major .view uses column index c*L8 + pos).
    wf1c = jnp.transpose(p["fc1_w"][:, H:].reshape(128, 16, L8),
                         (2, 1, 0)).reshape(16 * L8, 128)                      # (32, 128)
    wf2t = p["fc2_w"]                                                          # (32, 128)
    slab128 = jnp.concatenate([wih, whh, wf1h, wf1c, wf2t], axis=0).astype(bf16)  # (256, 128)

    # misc f32 tile: every bias + fc3 weight/bias, one (8, 256) DMA
    misc = jnp.zeros((8, 256), jnp.float32)
    misc = misc.at[0, :256].set(p["conv1_b"])
    misc = misc.at[1, :64].set(p["conv2_b"])
    misc = misc.at[2, :256].set(p["conv3_b"])
    misc = misc.at[3, :16].set(p["conv4_b"])
    misc = misc.at[4, :4 * H].set(p["lstm_b_ih"] + p["lstm_b_hh"])
    misc = misc.at[5, :128].set(p["fc1_b"])
    misc = misc.at[6, :32].set(p["fc2_b"])
    misc = misc.at[7, :32].set(p["fc3_w"][0])
    misc = misc.at[7, 32].set(p["fc3_b"][0])

    return {"conv256": conv256, "w2": w2.astype(bf16), "slab128": slab128, "misc": misc}


@jax.jit
def sa_net_forward(inputs, r):
    """inputs: (B, seq, E) or (seq, E) f32. r: packed params from rearrange_params.
    Returns (B, 1) sigmoid outputs (one per sentence)."""
    if inputs.ndim == 2:
        inputs = inputs[None]
    B, seq, emb = inputs.shape
    n = min(L, seq)

    # x0 = zeros(1,1,L,E); x0[:, :, :n, :] = inputs[:n]   (per sentence)
    x0 = jnp.zeros((B, L, emb), jnp.float32).at[:, :n, :].set(inputs[:, :n, :])
    # conv1 im2col (7-tap "same" unfold) built wrapper-side ...
    x0p = jnp.pad(x0, ((0, 0), (3, 3), (0, 0)))
    x0_unf = jnp.concatenate([x0p[:, k:k + L, :] for k in range(7)], axis=2)   # (B, L, 7E)
    # ... with rows permuted even-output-positions-first so the first in-kernel
    # max-pool is max(top half, bottom half) of contiguous slices.
    x0_unf = jnp.concatenate([x0_unf[:, 0::2, :], x0_unf[:, 1::2, :]], axis=1)

    # per-sentence bf16 activation slab, padded to whole (16,128) bf16 tiles:
    # rows 0..L-1 = conv1 im2col (lane-padded 112->128), rows L..L+seq-1 = LSTM inputs.
    rows = max(32, -((L + seq) // -16) * 16)
    x_slab = jnp.zeros((B, rows, 128), jnp.bfloat16)
    x_slab = x_slab.at[:, :L, :7 * E].set(x0_unf.astype(jnp.bfloat16))
    x_slab = x_slab.at[:, L:L + seq, :E].set(inputs.astype(jnp.bfloat16))

    kernel = functools.partial(_sa_net_kernel, seq)

    def resident(shape):                      # weight slab: same block every grid step
        return pl.BlockSpec(shape, lambda b, _n=len(shape): (0,) * _n)

    out = pl.pallas_call(
        kernel,
        grid=(B,),
        in_specs=[
            pl.BlockSpec((1, rows, 128), lambda b: (b, 0, 0)),   # per-sentence activations
            resident(r["conv256"].shape),
            resident(r["w2"].shape),
            resident(r["slab128"].shape),
            resident(r["misc"].shape),
        ],
        out_specs=pl.BlockSpec((1, 1, 128), lambda b: (b, 0, 0)),
        out_shape=jax.ShapeDtypeStruct((B, 1, 128), jnp.float32),
        compiler_params=pltpu.CompilerParams(
            dimension_semantics=("parallel",)),   # v7x: batch split across both TCs
    )(x_slab, r["conv256"], r["w2"], r["slab128"], r["misc"])
    return out[:, 0, :1]                                                       # (B, 1)


def reference_forward(inputs, p):
    """Plain-JAX f32 mirror of the PyTorch forward for ONE sentence (correctness check)."""
    seq, emb = inputs.shape

    xg = inputs @ p["lstm_w_ih"].T + (p["lstm_b_ih"] + p["lstm_b_hh"])[None, :]
    hx = jnp.zeros((1, H)); cx = jnp.zeros((1, H)); hs = []
    for t in range(seq):
        g = xg[t:t + 1] + hx @ p["lstm_w_hh"].T
        i = jax.nn.sigmoid(g[:, :H]); f = jax.nn.sigmoid(g[:, H:2 * H])
        gg = jnp.tanh(g[:, 2 * H:3 * H]); o = jax.nn.sigmoid(g[:, 3 * H:])
        cx = f * cx + i * gg
        hx = o * jnp.tanh(cx)
        hs.append(hx)
    hx_mean = jnp.mean(jnp.concatenate(hs, 0), axis=0, keepdims=True)

    n = min(L, seq)
    x0 = jnp.zeros((L, emb)).at[:n].set(inputs[:n])

    def conv1d(a, w, b, k):          # a: (len, cin), w: (cout, cin, k) torch layout
        pad = (k - 1) // 2
        ap = jnp.pad(a, ((pad, pad), (0, 0)))
        return sum(ap[j:j + a.shape[0]] @ w[:, :, j].T for j in range(k)) + b[None, :]

    def pool(a):
        return a.reshape(a.shape[0] // 2, 2, a.shape[1]).max(axis=1)

    w1 = jnp.transpose(p["conv1_w"][:, 0], (0, 2, 1))                  # (256, E, 7)
    a1 = jax.nn.sigmoid(pool(conv1d(x0, w1, p["conv1_b"], 7)))
    a2 = jax.nn.sigmoid(pool(conv1d(a1, p["conv2_w"], p["conv2_b"], 5)))
    a3 = jax.nn.sigmoid(pool(conv1d(a2, p["conv3_w"], p["conv3_b"], 3)))
    a4 = jax.nn.sigmoid(a3 @ p["conv4_w"][:, :, 0].T + p["conv4_b"][None, :])  # (L/8, 16)
    flat = a4.T.reshape(1, -1)                                         # channel-major .view
    x = jnp.concatenate([hx_mean, flat], axis=1)
    x = jax.nn.sigmoid(x @ p["fc1_w"].T + p["fc1_b"])
    x = jax.nn.sigmoid(x @ p["fc2_w"].T + p["fc2_b"])
    x = jax.nn.sigmoid(x @ p["fc3_w"].T + p["fc3_b"])
    return x


if __name__ == "__main__":
    key = jax.random.PRNGKey(0)
    pkey, xkey = jax.random.split(key)
    params = init_params(pkey)
    rparams = rearrange_params(params)
    inputs = jax.random.normal(xkey, (BATCH, SEQ_LEN, EMBEDDING_LENGTH), jnp.float32)

    out = jax.block_until_ready(sa_net_forward(inputs, rparams))
    ref = jnp.stack([reference_forward(inputs[b], params)[0] for b in range(BATCH)], axis=0)

    assert out.shape == (BATCH, 1)
    assert bool(jnp.all(jnp.isfinite(out)))
    assert bool(jnp.allclose(out, ref, atol=2e-2)), (out, ref)
    print("KERNEL_OK")
</pallas_src>

<mosaic_0001>
module attributes {stable_mosaic.version = 11 : i64} {
  func.func @_sa_net_kernel(%arg0: i32, %arg1: memref<1x32x128xbf16, #tpu.memory_space<vmem>>, %arg2: memref<336x256xbf16, #tpu.memory_space<vmem>>, %arg3: memref<1280x64xbf16, #tpu.memory_space<vmem>>, %arg4: memref<256x128xbf16, #tpu.memory_space<vmem>>, %arg5: memref<8x256xf32, #tpu.memory_space<vmem>>, %arg6: memref<1x1x128xf32, #tpu.memory_space<vmem>>) attributes {dimension_semantics = [#tpu.dimension_semantics<parallel>], iteration_bounds = array<i64: 4>, scalar_prefetch = 0 : i64, scratch_operands = 0 : i64, tpu.core_type = #tpu.core_type<tc>, window_params = [{transform_indices = @transform_0, window_bounds = array<i64: 1, 32, 128>}, {pipeline_mode = #tpu.pipeline_mode<synchronous>, transform_indices = @transform_1, window_bounds = array<i64: 336, 256>}, {pipeline_mode = #tpu.pipeline_mode<synchronous>, transform_indices = @transform_2, window_bounds = array<i64: 1280, 64>}, {pipeline_mode = #tpu.pipeline_mode<synchronous>, transform_indices = @transform_3, window_bounds = array<i64: 256, 128>}, {pipeline_mode = #tpu.pipeline_mode<synchronous>, transform_indices = @transform_4, window_bounds = array<i64: 8, 256>}, {transform_indices = @transform_5, window_bounds = array<i64: 1, 1, 128>}]} {
    %c0 = arith.constant 0 : index
    %c0_0 = arith.constant 0 : index
    %c0_1 = arith.constant 0 : index
    %0 = vector.load %arg1[%c0, %c0_0, %c0_1] : memref<1x32x128xbf16, #tpu.memory_space<vmem>>, vector<1x32x128xbf16>
    %1 = vector.shape_cast %0 : vector<1x32x128xbf16> to vector<32x128xbf16>
    %c0_2 = arith.constant 0 : index
    %c0_3 = arith.constant 0 : index
    %2 = vector.load %arg2[%c0_2, %c0_3] : memref<336x256xbf16, #tpu.memory_space<vmem>>, vector<128x256xbf16>
    %c128 = arith.constant 128 : index
    %c0_4 = arith.constant 0 : index
    %3 = vector.load %arg2[%c128, %c0_4] : memref<336x256xbf16, #tpu.memory_space<vmem>>, vector<192x256xbf16>
    %c320 = arith.constant 320 : index
    %c0_5 = arith.constant 0 : index
    %4 = vector.load %arg2[%c320, %c0_5] : memref<336x256xbf16, #tpu.memory_space<vmem>>, vector<16x256xbf16>
    %c0_6 = arith.constant 0 : index
    %c0_7 = arith.constant 0 : index
    %5 = vector.load %arg4[%c0_6, %c0_7] : memref<256x128xbf16, #tpu.memory_space<vmem>>, vector<128x128xbf16>
    %c128_8 = arith.constant 128 : index
    %c0_9 = arith.constant 0 : index
    %6 = vector.load %arg4[%c128_8, %c0_9] : memref<256x128xbf16, #tpu.memory_space<vmem>>, vector<32x128xbf16>
    %c160 = arith.constant 160 : index
    %c0_10 = arith.constant 0 : index
    %7 = vector.load %arg4[%c160, %c0_10] : memref<256x128xbf16, #tpu.memory_space<vmem>>, vector<32x128xbf16>
    %c192 = arith.constant 192 : index
    %c0_11 = arith.constant 0 : index
    %8 = vector.load %arg4[%c192, %c0_11] : memref<256x128xbf16, #tpu.memory_space<vmem>>, vector<32x128xbf16>
    %c224 = arith.constant 224 : index
    %c0_12 = arith.constant 0 : index
    %9 = vector.load %arg4[%c224, %c0_12] : memref<256x128xbf16, #tpu.memory_space<vmem>>, vector<32x128xbf16>
    %c0_13 = arith.constant 0 : index
    %c0_14 = arith.constant 0 : index
    %10 = vector.load %arg5[%c0_13, %c0_14] : memref<8x256xf32, #tpu.memory_space<vmem>>, vector<1x256xf32>
    %c1 = arith.constant 1 : index
    %c0_15 = arith.constant 0 : index
    %11 = vector.load %arg5[%c1, %c0_15] : memref<8x256xf32, #tpu.memory_space<vmem>>, vector<1x64xf32>
    %c2 = arith.constant 2 : index
    %c0_16 = arith.constant 0 : index
    %12 = vector.load %arg5[%c2, %c0_16] : memref<8x256xf32, #tpu.memory_space<vmem>>, vector<1x256xf32>
    %c3 = arith.constant 3 : index
    %c0_17 = arith.constant 0 : index
    %13 = vector.load %arg5[%c3, %c0_17] : memref<8x256xf32, #tpu.memory_space<vmem>>, vector<1x16xf32>
    %c4 = arith.constant 4 : index
    %c0_18 = arith.constant 0 : index
    %14 = vector.load %arg5[%c4, %c0_18] : memref<8x256xf32, #tpu.memory_space<vmem>>, vector<1x128xf32>
    %c5 = arith.constant 5 : index
    %c0_19 = arith.constant 0 : index
    %15 = vector.load %arg5[%c5, %c0_19] : memref<8x256xf32, #tpu.memory_space<vmem>>, vector<1x128xf32>
    %c6 = arith.constant 6 : index
    %c0_20 = arith.constant 0 : index
    %16 = vector.load %arg5[%c6, %c0_20] : memref<8x256xf32, #tpu.memory_space<vmem>>, vector<1x32xf32>
    %c7 = arith.constant 7 : index
    %c0_21 = arith.constant 0 : index
    %17 = vector.load %arg5[%c7, %c0_21] : memref<8x256xf32, #tpu.memory_space<vmem>>, vector<1x32xf32>
    %c7_22 = arith.constant 7 : index
    %c32 = arith.constant 32 : index
    %18 = vector.load %arg5[%c7_22, %c32] : memref<8x256xf32, #tpu.memory_space<vmem>>, vector<1x1xf32>
    %19 = vector.extract_strided_slice %1 {offsets = [16, 0], sizes = [8, 128], strides = [1, 1]} : vector<32x128xbf16> to vector<8x128xbf16>
    %cst = arith.constant dense<0.000000e+00> : vector<8x128xf32>
    %20 = tpu.matmul %19, %5, %cst {dimension_numbers = #tpu.dot_dimension_numbers<[1], [0], [0], [1], [0, 0, 1, 1], [], []>} : vector<8x128xbf16>, vector<128x128xbf16>, vector<8x128xf32> -> vector<8x128xf32>
    %21 = vector.broadcast %14 : vector<1x128xf32> to vector<8x128xf32>
    %22 = arith.addf %20, %21 : vector<8x128xf32>
    %cst_23 = arith.constant 0.000000e+00 : f32
    %23 = vector.broadcast %cst_23 : f32 to vector<1x32xf32>
    %cst_24 = arith.constant 0.000000e+00 : f32
    %24 = vector.broadcast %cst_24 : f32 to vector<1x32xf32>
    %cst_25 = arith.constant 0.000000e+00 : f32
    %25 = vector.broadcast %cst_25 : f32 to vector<1x32xf32>
    %26 = vector.extract_strided_slice %22 {offsets = [0, 0], sizes = [1, 128], strides = [1, 1]} : vector<8x128xf32> to vector<1x128xf32>
    %27 = arith.truncf %23 : vector<1x32xf32> to vector<1x32xbf16>
    %cst_26 = arith.constant dense<0.000000e+00> : vector<1x128xf32>
    %28 = tpu.matmul %27, %6, %cst_26 {dimension_numbers = #tpu.dot_dimension_numbers<[1], [0], [0], [1], [0, 0, 1, 1], [], []>} : vector<1x32xbf16>, vector<32x128xbf16>, vector<1x128xf32> -> vector<1x128xf32>
    %29 = arith.addf %26, %28 : vector<1x128xf32>
    %30 = arith.negf %29 : vector<1x128xf32>
    %31 = math.exp %30 : vector<1x128xf32>
    %cst_27 = arith.constant 1.000000e+00 : f32
    %32 = vector.broadcast %cst_27 : f32 to vector<1x128xf32>
    %33 = arith.addf %32, %31 : vector<1x128xf32>
    %34 = arith.divf %32, %33 : vector<1x128xf32>
    %35 = math.tanh %29 : vector<1x128xf32>
    %36 = vector.extract_strided_slice %34 {offsets = [0, 32], sizes = [1, 32], strides = [1, 1]} : vector<1x128xf32> to vector<1x32xf32>
    %37 = arith.mulf %36, %24 : vector<1x32xf32>
    %38 = vector.extract_strided_slice %34 {offsets = [0, 0], sizes = [1, 32], strides = [1, 1]} : vector<1x128xf32> to vector<1x32xf32>
    %39 = vector.extract_strided_slice %35 {offsets = [0, 64], sizes = [1, 32], strides = [1, 1]} : vector<1x128xf32> to vector<1x32xf32>
    %40 = arith.mulf %38, %39 : vector<1x32xf32>
    %41 = arith.addf %37, %40 : vector<1x32xf32>
    %42 = vector.extract_strided_slice %34 {offsets = [0, 96], sizes = [1, 32], strides = [1, 1]} : vector<1x128xf32> to vector<1x32xf32>
    %43 = math.tanh %41 : vector<1x32xf32>
    %44 = arith.mulf %42, %43 : vector<1x32xf32>
    %45 = arith.addf %25, %44 : vector<1x32xf32>
    %46 = vector.extract_strided_slice %22 {offsets = [1, 0], sizes = [1, 128], strides = [1, 1]} : vector<8x128xf32> to vector<1x128xf32>
    %47 = arith.truncf %44 : vector<1x32xf32> to vector<1x32xbf16>
    %cst_28 = arith.constant dense<0.000000e+00> : vector<1x128xf32>
    %48 = tpu.matmul %47, %6, %cst_28 {dimension_numbers = #tpu.dot_dimension_numbers<[1], [0], [0], [1], [0, 0, 1, 1], [], []>} : vector<1x32xbf16>, vector<32x128xbf16>, vector<1x128xf32> -> vector<1x128xf32>
    %49 = arith.addf %46, %48 : vector<1x128xf32>
    %50 = arith.negf %49 : vector<1x128xf32>
    %51 = math.exp %50 : vector<1x128xf32>
    %cst_29 = arith.constant 1.000000e+00 : f32
    %52 = vector.broadcast %cst_29 : f32 to vector<1x128xf32>
    %53 = arith.addf %52, %51 : vector<1x128xf32>
    %54 = arith.divf %52, %53 : vector<1x128xf32>
    %55 = math.tanh %49 : vector<1x128xf32>
    %56 = vector.extract_strided_slice %54 {offsets = [0, 32], sizes = [1, 32], strides = [1, 1]} : vector<1x128xf32> to vector<1x32xf32>
    %57 = arith.mulf %56, %41 : vector<1x32xf32>
    %58 = vector.extract_strided_slice %54 {offsets = [0, 0], sizes = [1, 32], strides = [1, 1]} : vector<1x128xf32> to vector<1x32xf32>
    %59 = vector.extract_strided_slice %55 {offsets = [0, 64], sizes = [1, 32], strides = [1, 1]} : vector<1x128xf32> to vector<1x32xf32>
    %60 = arith.mulf %58, %59 : vector<1x32xf32>
    %61 = arith.addf %57, %60 : vector<1x32xf32>
    %62 = vector.extract_strided_slice %54 {offsets = [0, 96], sizes = [1, 32], strides = [1, 1]} : vector<1x128xf32> to vector<1x32xf32>
    %63 = math.tanh %61 : vector<1x32xf32>
    %64 = arith.mulf %62, %63 : vector<1x32xf32>
    %65 = arith.addf %45, %64 : vector<1x32xf32>
    %66 = vector.extract_strided_slice %22 {offsets = [2, 0], sizes = [1, 128], strides = [1, 1]} : vector<8x128xf32> to vector<1x128xf32>
    %67 = arith.truncf %64 : vector<1x32xf32> to vector<1x32xbf16>
    %cst_30 = arith.constant dense<0.000000e+00> : vector<1x128xf32>
    %68 = tpu.matmul %67, %6, %cst_30 {dimension_numbers = #tpu.dot_dimension_numbers<[1], [0], [0], [1], [0, 0, 1, 1], [], []>} : vector<1x32xbf16>, vector<32x128xbf16>, vector<1x128xf32> -> vector<1x128xf32>
    %69 = arith.addf %66, %68 : vector<1x128xf32>
    %70 = arith.negf %69 : vector<1x128xf32>
    %71 = math.exp %70 : vector<1x128xf32>
    %cst_31 = arith.constant 1.000000e+00 : f32
    %72 = vector.broadcast %cst_31 : f32 to vector<1x128xf32>
    %73 = arith.addf %72, %71 : vector<1x128xf32>
    %74 = arith.divf %72, %73 : vector<1x128xf32>
    %75 = math.tanh %69 : vector<1x128xf32>
    %76 = vector.extract_strided_slice %74 {offsets = [0, 32], sizes = [1, 32], strides = [1, 1]} : vector<1x128xf32> to vector<1x32xf32>
    %77 = arith.mulf %76, %61 : vector<1x32xf32>
    %78 = vector.extract_strided_slice %74 {offsets = [0, 0], sizes = [1, 32], strides = [1, 1]} : vector<1x128xf32> to vector<1x32xf32>
    %79 = vector.extract_strided_slice %75 {offsets = [0, 64], sizes = [1, 32], strides = [1, 1]} : vector<1x128xf32> to vector<1x32xf32>
    %80 = arith.mulf %78, %79 : vector<1x32xf32>
    %81 = arith.addf %77, %80 : vector<1x32xf32>
    %82 = vector.extract_strided_slice %74 {offsets = [0, 96], sizes = [1, 32], strides = [1, 1]} : vector<1x128xf32> to vector<1x32xf32>
    %83 = math.tanh %81 : vector<1x32xf32>
    %84 = arith.mulf %82, %83 : vector<1x32xf32>
    %85 = arith.addf %65, %84 : vector<1x32xf32>
    %86 = vector.extract_strided_slice %22 {offsets = [3, 0], sizes = [1, 128], strides = [1, 1]} : vector<8x128xf32> to vector<1x128xf32>
    %87 = arith.truncf %84 : vector<1x32xf32> to vector<1x32xbf16>
    %cst_32 = arith.constant dense<0.000000e+00> : vector<1x128xf32>
    %88 = tpu.matmul %87, %6, %cst_32 {dimension_numbers = #tpu.dot_dimension_numbers<[1], [0], [0], [1], [0, 0, 1, 1], [], []>} : vector<1x32xbf16>, vector<32x128xbf16>, vector<1x128xf32> -> vector<1x128xf32>
    %89 = arith.addf %86, %88 : vector<1x128xf32>
    %90 = arith.negf %89 : vector<1x128xf32>
    %91 = math.exp %90 : vector<1x128xf32>
    %cst_33 = arith.constant 1.000000e+00 : f32
    %92 = vector.broadcast %cst_33 : f32 to vector<1x128xf32>
    %93 = arith.addf %92, %91 : vector<1x128xf32>
    %94 = arith.divf %92, %93 : vector<1x128xf32>
    %95 = math.tanh %89 : vector<1x128xf32>
    %96 = vector.extract_strided_slice %94 {offsets = [0, 32], sizes = [1, 32], strides = [1, 1]} : vector<1x128xf32> to vector<1x32xf32>
    %97 = arith.mulf %96, %81 : vector<1x32xf32>
    %98 = vector.extract_strided_slice %94 {offsets = [0, 0], sizes = [1, 32], strides = [1, 1]} : vector<1x128xf32> to vector<1x32xf32>
    %99 = vector.extract_strided_slice %95 {offsets = [0, 64], sizes = [1, 32], strides = [1, 1]} : vector<1x128xf32> to vector<1x32xf32>
    %100 = arith.mulf %98, %99 : vector<1x32xf32>
    %101 = arith.addf %97, %100 : vector<1x32xf32>
    %102 = vector.extract_strided_slice %94 {offsets = [0, 96], sizes = [1, 32], strides = [1, 1]} : vector<1x128xf32> to vector<1x32xf32>
    %103 = math.tanh %101 : vector<1x32xf32>
    %104 = arith.mulf %102, %103 : vector<1x32xf32>
    %105 = arith.addf %85, %104 : vector<1x32xf32>
    %106 = vector.extract_strided_slice %22 {offsets = [4, 0], sizes = [1, 128], strides = [1, 1]} : vector<8x128xf32> to vector<1x128xf32>
    %107 = arith.truncf %104 : vector<1x32xf32> to vector<1x32xbf16>
    %cst_34 = arith.constant dense<0.000000e+00> : vector<1x128xf32>
    %108 = tpu.matmul %107, %6, %cst_34 {dimension_numbers = #tpu.dot_dimension_numbers<[1], [0], [0], [1], [0, 0, 1, 1], [], []>} : vector<1x32xbf16>, vector<32x128xbf16>, vector<1x128xf32> -> vector<1x128xf32>
    %109 = arith.addf %106, %108 : vector<1x128xf32>
    %110 = arith.negf %109 : vector<1x128xf32>
    %111 = math.exp %110 : vector<1x128xf32>
    %cst_35 = arith.constant 1.000000e+00 : f32
    %112 = vector.broadcast %cst_35 : f32 to vector<1x128xf32>
    %113 = arith.addf %112, %111 : vector<1x128xf32>
    %114 = arith.divf %112, %113 : vector<1x128xf32>
    %115 = math.tanh %109 : vector<1x128xf32>
    %116 = vector.extract_strided_slice %114 {offsets = [0, 32], sizes = [1, 32], strides = [1, 1]} : vector<1x128xf32> to vector<1x32xf32>
    %117 = arith.mulf %116, %101 : vector<1x32xf32>
    %118 = vector.extract_strided_slice %114 {offsets = [0, 0], sizes = [1, 32], strides = [1, 1]} : vector<1x128xf32> to vector<1x32xf32>
    %119 = vector.extract_strided_slice %115 {offsets = [0, 64], sizes = [1, 32], strides = [1, 1]} : vector<1x128xf32> to vector<1x32xf32>
    %120 = arith.mulf %118, %119 : vector<1x32xf32>
    %121 = arith.addf %117, %120 : vector<1x32xf32>
    %122 = vector.extract_strided_slice %114 {offsets = [0, 96], sizes = [1, 32], strides = [1, 1]} : vector<1x128xf32> to vector<1x32xf32>
    %123 = math.tanh %121 : vector<1x32xf32>
    %124 = arith.mulf %122, %123 : vector<1x32xf32>
    %125 = arith.addf %105, %124 : vector<1x32xf32>
    %126 = vector.extract_strided_slice %22 {offsets = [5, 0], sizes = [1, 128], strides = [1, 1]} : vector<8x128xf32> to vector<1x128xf32>
    %127 = arith.truncf %124 : vector<1x32xf32> to vector<1x32xbf16>
    %cst_36 = arith.constant dense<0.000000e+00> : vector<1x128xf32>
    %128 = tpu.matmul %127, %6, %cst_36 {dimension_numbers = #tpu.dot_dimension_numbers<[1], [0], [0], [1], [0, 0, 1, 1], [], []>} : vector<1x32xbf16>, vector<32x128xbf16>, vector<1x128xf32> -> vector<1x128xf32>
    %129 = arith.addf %126, %128 : vector<1x128xf32>
    %130 = arith.negf %129 : vector<1x128xf32>
    %131 = math.exp %130 : vector<1x128xf32>
    %cst_37 = arith.constant 1.000000e+00 : f32
    %132 = vector.broadcast %cst_37 : f32 to vector<1x128xf32>
    %133 = arith.addf %132, %131 : vector<1x128xf32>
    %134 = arith.divf %132, %133 : vector<1x128xf32>
    %135 = math.tanh %129 : vector<1x128xf32>
    %136 = vector.extract_strided_slice %134 {offsets = [0, 32], sizes = [1, 32], strides = [1, 1]} : vector<1x128xf32> to vector<1x32xf32>
    %137 = arith.mulf %136, %121 : vector<1x32xf32>
    %138 = vector.extract_strided_slice %134 {offsets = [0, 0], sizes = [1, 32], strides = [1, 1]} : vector<1x128xf32> to vector<1x32xf32>
    %139 = vector.extract_strided_slice %135 {offsets = [0, 64], sizes = [1, 32], strides = [1, 1]} : vector<1x128xf32> to vector<1x32xf32>
    %140 = arith.mulf %138, %139 : vector<1x32xf32>
    %141 = arith.addf %137, %140 : vector<1x32xf32>
    %142 = vector.extract_strided_slice %134 {offsets = [0, 96], sizes = [1, 32], strides = [1, 1]} : vector<1x128xf32> to vector<1x32xf32>
    %143 = math.tanh %141 : vector<1x32xf32>
    %144 = arith.mulf %142, %143 : vector<1x32xf32>
    %145 = arith.addf %125, %144 : vector<1x32xf32>
    %146 = vector.extract_strided_slice %22 {offsets = [6, 0], sizes = [1, 128], strides = [1, 1]} : vector<8x128xf32> to vector<1x128xf32>
    %147 = arith.truncf %144 : vector<1x32xf32> to vector<1x32xbf16>
    %cst_38 = arith.constant dense<0.000000e+00> : vector<1x128xf32>
    %148 = tpu.matmul %147, %6, %cst_38 {dimension_numbers = #tpu.dot_dimension_numbers<[1], [0], [0], [1], [0, 0, 1, 1], [], []>} : vector<1x32xbf16>, vector<32x128xbf16>, vector<1x128xf32> -> vector<1x128xf32>
    %149 = arith.addf %146, %148 : vector<1x128xf32>
    %150 = arith.negf %149 : vector<1x128xf32>
    %151 = math.exp %150 : vector<1x128xf32>
    %cst_39 = arith.constant 1.000000e+00 : f32
    %152 = vector.broadcast %cst_39 : f32 to vector<1x128xf32>
    %153 = arith.addf %152, %151 : vector<1x128xf32>
    %154 = arith.divf %152, %153 : vector<1x128xf32>
    %155 = math.tanh %149 : vector<1x128xf32>
    %156 = vector.extract_strided_slice %154 {offsets = [0, 32], sizes = [1, 32], strides = [1, 1]} : vector<1x128xf32> to vector<1x32xf32>
    %157 = arith.mulf %156, %141 : vector<1x32xf32>
    %158 = vector.extract_strided_slice %154 {offsets = [0, 0], sizes = [1, 32], strides = [1, 1]} : vector<1x128xf32> to vector<1x32xf32>
    %159 = vector.extract_strided_slice %155 {offsets = [0, 64], sizes = [1, 32], strides = [1, 1]} : vector<1x128xf32> to vector<1x32xf32>
    %160 = arith.mulf %158, %159 : vector<1x32xf32>
    %161 = arith.addf %157, %160 : vector<1x32xf32>
    %162 = vector.extract_strided_slice %154 {offsets = [0, 96], sizes = [1, 32], strides = [1, 1]} : vector<1x128xf32> to vector<1x32xf32>
    %163 = math.tanh %161 : vector<1x32xf32>
    %164 = arith.mulf %162, %163 : vector<1x32xf32>
    %165 = arith.addf %145, %164 : vector<1x32xf32>
    %166 = vector.extract_strided_slice %22 {offsets = [7, 0], sizes = [1, 128], strides = [1, 1]} : vector<8x128xf32> to vector<1x128xf32>
    %167 = arith.truncf %164 : vector<1x32xf32> to vector<1x32xbf16>
    %cst_40 = arith.constant dense<0.000000e+00> : vector<1x128xf32>
    %168 = tpu.matmul %167, %6, %cst_40 {dimension_numbers = #tpu.dot_dimension_numbers<[1], [0], [0], [1], [0, 0, 1, 1], [], []>} : vector<1x32xbf16>, vector<32x128xbf16>, vector<1x128xf32> -> vector<1x128xf32>
    %169 = arith.addf %166, %168 : vector<1x128xf32>
    %170 = arith.negf %169 : vector<1x128xf32>
    %171 = math.exp %170 : vector<1x128xf32>
    %cst_41 = arith.constant 1.000000e+00 : f32
    %172 = vector.broadcast %cst_41 : f32 to vector<1x128xf32>
    %173 = arith.addf %172, %171 : vector<1x128xf32>
    %174 = arith.divf %172, %173 : vector<1x128xf32>
    %175 = math.tanh %169 : vector<1x128xf32>
    %176 = vector.extract_strided_slice %174 {offsets = [0, 32], sizes = [1, 32], strides = [1, 1]} : vector<1x128xf32> to vector<1x32xf32>
    %177 = arith.mulf %176, %161 : vector<1x32xf32>
    %178 = vector.extract_strided_slice %174 {offsets = [0, 0], sizes = [1, 32], strides = [1, 1]} : vector<1x128xf32> to vector<1x32xf32>
    %179 = vector.extract_strided_slice %175 {offsets = [0, 64], sizes = [1, 32], strides = [1, 1]} : vector<1x128xf32> to vector<1x32xf32>
    %180 = arith.mulf %178, %179 : vector<1x32xf32>
    %181 = arith.addf %177, %180 : vector<1x32xf32>
    %182 = vector.extract_strided_slice %174 {offsets = [0, 96], sizes = [1, 32], strides = [1, 1]} : vector<1x128xf32> to vector<1x32xf32>
    %183 = math.tanh %181 : vector<1x32xf32>
    %184 = arith.mulf %182, %183 : vector<1x32xf32>
    %185 = arith.addf %165, %184 : vector<1x32xf32>
    %cst_42 = arith.constant 1.250000e-01 : f32
    %186 = vector.broadcast %cst_42 : f32 to vector<1x32xf32>
    %187 = arith.mulf %185, %186 : vector<1x32xf32>
    %188 = vector.extract_strided_slice %1 {offsets = [0, 0], sizes = [16, 128], strides = [1, 1]} : vector<32x128xbf16> to vector<16x128xbf16>
    %cst_43 = arith.constant dense<0.000000e+00> : vector<16x256xf32>
    %189 = tpu.matmul %188, %2, %cst_43 {dimension_numbers = #tpu.dot_dimension_numbers<[1], [0], [0], [1], [0, 0, 1, 1], [], []>} : vector<16x128xbf16>, vector<128x256xbf16>, vector<16x256xf32> -> vector<16x256xf32>
    %190 = vector.broadcast %10 : vector<1x256xf32> to vector<16x256xf32>
    %191 = arith.addf %189, %190 : vector<16x256xf32>
    %192 = vector.extract_strided_slice %191 {offsets = [0, 0], sizes = [8, 256], strides = [1, 1]} : vector<16x256xf32> to vector<8x256xf32>
    %193 = vector.extract_strided_slice %191 {offsets = [8, 0], sizes = [8, 256], strides = [1, 1]} : vector<16x256xf32> to vector<8x256xf32>
    %194 = arith.maximumf %192, %193 : vector<8x256xf32>
    %195 = arith.negf %194 : vector<8x256xf32>
    %196 = math.exp %195 : vector<8x256xf32>
    %cst_44 = arith.constant 1.000000e+00 : f32
    %197 = vector.broadcast %cst_44 : f32 to vector<8x256xf32>
    %198 = arith.addf %197, %196 : vector<8x256xf32>
    %199 = arith.divf %197, %198 : vector<8x256xf32>
    %cst_45 = arith.constant 0.000000e+00 : f32
    %200 = vector.broadcast %cst_45 : f32 to vector<2x256xf32>
    %201 = tpu.concatenate %200, %199, %200 in 0 : vector<2x256xf32>, vector<8x256xf32>, vector<2x256xf32> -> vector<12x256xf32>
    %202 = vector.extract_strided_slice %201 {offsets = [0, 0], sizes = [8, 256], strides = [1, 1]} : vector<12x256xf32> to vector<8x256xf32>
    %203 = arith.truncf %202 : vector<8x256xf32> to vector<8x256xbf16>
    %204 = vector.extract_strided_slice %201 {offsets = [1, 0], sizes = [8, 256], strides = [1, 1]} : vector<12x256xf32> to vector<8x256xf32>
    %205 = arith.truncf %204 : vector<8x256xf32> to vector<8x256xbf16>
    %206 = vector.extract_strided_slice %201 {offsets = [2, 0], sizes = [8, 256], strides = [1, 1]} : vector<12x256xf32> to vector<8x256xf32>
    %207 = arith.truncf %206 : vector<8x256xf32> to vector<8x256xbf16>
    %208 = vector.extract_strided_slice %201 {offsets = [3, 0], sizes = [8, 256], strides = [1, 1]} : vector<12x256xf32> to vector<8x256xf32>
    %209 = arith.truncf %208 : vector<8x256xf32> to vector<8x256xbf16>
    %210 = vector.extract_strided_slice %201 {offsets = [4, 0], sizes = [8, 256], strides = [1, 1]} : vector<12x256xf32> to vector<8x256xf32>
    %211 = arith.truncf %210 : vector<8x256xf32> to vector<8x256xbf16>
    %212 = tpu.concatenate %203, %205, %207, %209, %211 in 1 : vector<8x256xbf16>, vector<8x256xbf16>, vector<8x256xbf16>, vector<8x256xbf16>, vector<8x256xbf16> -> vector<8x1280xbf16>
    %c0_46 = arith.constant 0 : index
    %c0_47 = arith.constant 0 : index
    %213 = vector.load %arg3[%c0_46, %c0_47] : memref<1280x64xbf16, #tpu.memory_space<vmem>>, vector<1280x64xbf16>
    %cst_48 = arith.constant dense<0.000000e+00> : vector<8x64xf32>
    %214 = tpu.matmul %212, %213, %cst_48 {dimension_numbers = #tpu.dot_dimension_numbers<[1], [0], [0], [1], [0, 0, 1, 1], [], []>} : vector<8x1280xbf16>, vector<1280x64xbf16>, vector<8x64xf32> -> vector<8x64xf32>
    %215 = vector.broadcast %11 : vector<1x64xf32> to vector<8x64xf32>
    %216 = arith.addf %214, %215 : vector<8x64xf32>
    %217 = vector.extract_strided_slice %216 {offsets = [0, 0], sizes = [1, 64], strides = [1, 1]} : vector<8x64xf32> to vector<1x64xf32>
    %218 = vector.extract_strided_slice %216 {offsets = [1, 0], sizes = [1, 64], strides = [1, 1]} : vector<8x64xf32> to vector<1x64xf32>
    %219 = arith.maximumf %217, %218 : vector<1x64xf32>
    %220 = vector.extract_strided_slice %216 {offsets = [2, 0], sizes = [1, 64], strides = [1, 1]} : vector<8x64xf32> to vector<1x64xf32>
    %221 = vector.extract_strided_slice %216 {offsets = [3, 0], sizes = [1, 64], strides = [1, 1]} : vector<8x64xf32> to vector<1x64xf32>
    %222 = arith.maximumf %220, %221 : vector<1x64xf32>
    %223 = vector.extract_strided_slice %216 {offsets = [4, 0], sizes = [1, 64], strides = [1, 1]} : vector<8x64xf32> to vector<1x64xf32>
    %224 = vector.extract_strided_slice %216 {offsets = [5, 0], sizes = [1, 64], strides = [1, 1]} : vector<8x64xf32> to vector<1x64xf32>
    %225 = arith.maximumf %223, %224 : vector<1x64xf32>
    %226 = vector.extract_strided_slice %216 {offsets = [6, 0], sizes = [1, 64], strides = [1, 1]} : vector<8x64xf32> to vector<1x64xf32>
    %227 = vector.extract_strided_slice %216 {offsets = [7, 0], sizes = [1, 64], strides = [1, 1]} : vector<8x64xf32> to vector<1x64xf32>
    %228 = arith.maximumf %226, %227 : vector<1x64xf32>
    %229 = tpu.concatenate %219, %222, %225, %228 in 0 : vector<1x64xf32>, vector<1x64xf32>, vector<1x64xf32>, vector<1x64xf32> -> vector<4x64xf32>
    %230 = arith.negf %229 : vector<4x64xf32>
    %231 = math.exp %230 : vector<4x64xf32>
    %cst_49 = arith.constant 1.000000e+00 : f32
    %232 = vector.broadcast %cst_49 : f32 to vector<4x64xf32>
    %233 = arith.addf %232, %231 : vector<4x64xf32>
    %234 = arith.divf %232, %233 : vector<4x64xf32>
    %cst_50 = arith.constant 0.000000e+00 : f32
    %235 = vector.broadcast %cst_50 : f32 to vector<1x64xf32>
    %236 = tpu.concatenate %235, %234, %235 in 0 : vector<1x64xf32>, vector<4x64xf32>, vector<1x64xf32> -> vector<6x64xf32>
    %237 = vector.extract_strided_slice %236 {offsets = [0, 0], sizes = [4, 64], strides = [1, 1]} : vector<6x64xf32> to vector<4x64xf32>
    %238 = arith.truncf %237 : vector<4x64xf32> to vector<4x64xbf16>
    %239 = vector.extract_strided_slice %236 {offsets = [1, 0], sizes = [4, 64], strides = [1, 1]} : vector<6x64xf32> to vector<4x64xf32>
    %240 = arith.truncf %239 : vector<4x64xf32> to vector<4x64xbf16>
    %241 = vector.extract_strided_slice %236 {offsets = [2, 0], sizes = [4, 64], strides = [1, 1]} : vector<6x64xf32> to vector<4x64xf32>
    %242 = arith.truncf %241 : vector<4x64xf32> to vector<4x64xbf16>
    %243 = tpu.concatenate %238, %240, %242 in 1 : vector<4x64xbf16>, vector<4x64xbf16>, vector<4x64xbf16> -> vector<4x192xbf16>
    %cst_51 = arith.constant dense<0.000000e+00> : vector<4x256xf32>
    %244 = tpu.matmul %243, %3, %cst_51 {dimension_numbers = #tpu.dot_dimension_numbers<[1], [0], [0], [1], [0, 0, 1, 1], [], []>} : vector<4x192xbf16>, vector<192x256xbf16>, vector<4x256xf32> -> vector<4x256xf32>
    %245 = vector.broadcast %12 : vector<1x256xf32> to vector<4x256xf32>
    %246 = arith.addf %244, %245 : vector<4x256xf32>
    %247 = vector.extract_strided_slice %246 {offsets = [0, 0], sizes = [1, 256], strides = [1, 1]} : vector<4x256xf32> to vector<1x256xf32>
    %248 = vector.extract_strided_slice %246 {offsets = [1, 0], sizes = [1, 256], strides = [1, 1]} : vector<4x256xf32> to vector<1x256xf32>
    %249 = arith.maximumf %247, %248 : vector<1x256xf32>
    %250 = vector.extract_strided_slice %246 {offsets = [2, 0], sizes = [1, 256], strides = [1, 1]} : vector<4x256xf32> to vector<1x256xf32>
    %251 = vector.extract_strided_slice %246 {offsets = [3, 0], sizes = [1, 256], strides = [1, 1]} : vector<4x256xf32> to vector<1x256xf32>
    %252 = arith.maximumf %250, %251 : vector<1x256xf32>
    %253 = tpu.concatenate %249, %252 in 0 : vector<1x256xf32>, vector<1x256xf32> -> vector<2x256xf32>
    %254 = arith.negf %253 : vector<2x256xf32>
    %255 = math.exp %254 : vector<2x256xf32>
    %cst_52 = arith.constant 1.000000e+00 : f32
    %256 = vector.broadcast %cst_52 : f32 to vector<2x256xf32>
    %257 = arith.addf %256, %255 : vector<2x256xf32>
    %258 = arith.divf %256, %257 : vector<2x256xf32>
    %259 = arith.truncf %258 : vector<2x256xf32> to vector<2x256xbf16>
    %cst_53 = arith.constant dense<0.000000e+00> : vector<2x16xf32>
    %260 = tpu.matmul %259, %4, %cst_53 {dimension_numbers = #tpu.dot_dimension_numbers<[1], [1], [0], [0], [0, 0, 1, 0], [], []>} : vector<2x256xbf16>, vector<16x256xbf16>, vector<2x16xf32> -> vector<2x16xf32>
    %261 = vector.broadcast %13 : vector<1x16xf32> to vector<2x16xf32>
    %262 = arith.addf %260, %261 : vector<2x16xf32>
    %263 = arith.negf %262 : vector<2x16xf32>
    %264 = math.exp %263 : vector<2x16xf32>
    %cst_54 = arith.constant 1.000000e+00 : f32
    %265 = vector.broadcast %cst_54 : f32 to vector<2x16xf32>
    %266 = arith.addf %265, %264 : vector<2x16xf32>
    %267 = arith.divf %265, %266 : vector<2x16xf32>
    %268 = arith.truncf %187 : vector<1x32xf32> to vector<1x32xbf16>
    %cst_55 = arith.constant dense<0.000000e+00> : vector<1x128xf32>
    %269 = tpu.matmul %268, %7, %cst_55 {dimension_numbers = #tpu.dot_dimension_numbers<[1], [0], [0], [1], [0, 0, 1, 1], [], []>} : vector<1x32xbf16>, vector<32x128xbf16>, vector<1x128xf32> -> vector<1x128xf32>
    %270 = arith.addf %269, %15 : vector<1x128xf32>
    %271 = vector.extract_strided_slice %267 {offsets = [0, 0], sizes = [1, 16], strides = [1, 1]} : vector<2x16xf32> to vector<1x16xf32>
    %272 = arith.truncf %271 : vector<1x16xf32> to vector<1x16xbf16>
    %273 = vector.extract_strided_slice %8 {offsets = [0, 0], sizes = [16, 128], strides = [1, 1]} : vector<32x128xbf16> to vector<16x128xbf16>
    %cst_56 = arith.constant dense<0.000000e+00> : vector<1x128xf32>
    %274 = tpu.matmul %272, %273, %cst_56 {dimension_numbers = #tpu.dot_dimension_numbers<[1], [0], [0], [1], [0, 0, 1, 1], [], []>} : vector<1x16xbf16>, vector<16x128xbf16>, vector<1x128xf32> -> vector<1x128xf32>
    %275 = arith.addf %270, %274 : vector<1x128xf32>
    %276 = vector.extract_strided_slice %267 {offsets = [1, 0], sizes = [1, 16], strides = [1, 1]} : vector<2x16xf32> to vector<1x16xf32>
    %277 = arith.truncf %276 : vector<1x16xf32> to vector<1x16xbf16>
    %278 = vector.extract_strided_slice %8 {offsets = [16, 0], sizes = [16, 128], strides = [1, 1]} : vector<32x128xbf16> to vector<16x128xbf16>
    %cst_57 = arith.constant dense<0.000000e+00> : vector<1x128xf32>
    %279 = tpu.matmul %277, %278, %cst_57 {dimension_numbers = #tpu.dot_dimension_numbers<[1], [0], [0], [1], [0, 0, 1, 1], [], []>} : vector<1x16xbf16>, vector<16x128xbf16>, vector<1x128xf32> -> vector<1x128xf32>
    %280 = arith.addf %275, %279 : vector<1x128xf32>
    %281 = arith.negf %280 : vector<1x128xf32>
    %282 = math.exp %281 : vector<1x128xf32>
    %cst_58 = arith.constant 1.000000e+00 : f32
    %283 = vector.broadcast %cst_58 : f32 to vector<1x128xf32>
    %284 = arith.addf %283, %282 : vector<1x128xf32>
    %285 = arith.divf %283, %284 : vector<1x128xf32>
    %286 = arith.truncf %285 : vector<1x128xf32> to vector<1x128xbf16>
    %cst_59 = arith.constant dense<0.000000e+00> : vector<1x32xf32>
    %287 = tpu.matmul %286, %9, %cst_59 {dimension_numbers = #tpu.dot_dimension_numbers<[1], [1], [0], [0], [0, 0, 1, 0], [], []>} : vector<1x128xbf16>, vector<32x128xbf16>, vector<1x32xf32> -> vector<1x32xf32>
    %288 = arith.addf %287, %16 : vector<1x32xf32>
    %289 = arith.negf %288 : vector<1x32xf32>
    %290 = math.exp %289 : vector<1x32xf32>
    %cst_60 = arith.constant 1.000000e+00 : f32
    %291 = vector.broadcast %cst_60 : f32 to vector<1x32xf32>
    %292 = arith.addf %291, %290 : vector<1x32xf32>
    %293 = arith.divf %291, %292 : vector<1x32xf32>
    %294 = arith.mulf %293, %17 : vector<1x32xf32>
    %cst_61 = arith.constant dense<0.000000e+00> : vector<1xf32>
    %295 = vector.multi_reduction <add>, %294, %cst_61 [1] : vector<1x32xf32> to vector<1xf32>
    %296 = vector.shape_cast %295 : vector<1xf32> to vector<1x1xf32>
    %297 = arith.addf %296, %18 : vector<1x1xf32>
    %298 = arith.negf %297 : vector<1x1xf32>
    %299 = math.exp %298 : vector<1x1xf32>
    %cst_62 = arith.constant 1.000000e+00 : f32
    %300 = vector.broadcast %cst_62 : f32 to vector<1x1xf32>
    %301 = arith.addf %300, %299 : vector<1x1xf32>
    %302 = arith.divf %300, %301 : vector<1x1xf32>
    %303 = vector.shape_cast %302 : vector<1x1xf32> to vector<1x1xf32>
    %304 = vector.broadcast %303 : vector<1x1xf32> to vector<1x128xf32>
    %c0_63 = arith.constant 0 : index
    %c0_64 = arith.constant 0 : index
    %c0_65 = arith.constant 0 : index
    %305 = vector.load %arg6[%c0_63, %c0_64, %c0_65] : memref<1x1x128xf32, #tpu.memory_space<vmem>>, vector<1x1x128xf32>
    %306 = vector.shape_cast %305 : vector<1x1x128xf32> to vector<1x128xf32>
    %307 = vector.shape_cast %304 : vector<1x128xf32> to vector<1x1x128xf32>
    tpu.vector_store %arg6[%c0_63, %c0_64, %c0_65], %307 {strides = array<i32>} : memref<1x1x128xf32, #tpu.memory_space<vmem>>, vector<1x1x128xf32>,
    return
  }
  func.func @transform_0(%arg0: i32) -> (i32, i32, i32) {
    %c0_i32 = arith.constant 0 : i32
    %c0_i32_0 = arith.constant 0 : i32
    %c0_i32_1 = arith.constant 0 : i32
    return %arg0, %c0_i32, %c0_i32_0 : i32, i32, i32
  }
  func.func @transform_1(%arg0: i32) -> (i32, i32) {
    %c0_i32 = arith.constant 0 : i32
    %c0_i32_0 = arith.constant 0 : i32
    %c0_i32_1 = arith.constant 0 : i32
    return %c0_i32, %c0_i32_0 : i32, i32
  }
  func.func @transform_2(%arg0: i32) -> (i32, i32) {
    %c0_i32 = arith.constant 0 : i32
    %c0_i32_0 = arith.constant 0 : i32
    %c0_i32_1 = arith.constant 0 : i32
    return %c0_i32, %c0_i32_0 : i32, i32
  }
  func.func @transform_3(%arg0: i32) -> (i32, i32) {
    %c0_i32 = arith.constant 0 : i32
    %c0_i32_0 = arith.constant 0 : i32
    %c0_i32_1 = arith.constant 0 : i32
    return %c0_i32, %c0_i32_0 : i32, i32
  }
  func.func @transform_4(%arg0: i32) -> (i32, i32) {
    %c0_i32 = arith.constant 0 : i32
    %c0_i32_0 = arith.constant 0 : i32
    %c0_i32_1 = arith.constant 0 : i32
    return %c0_i32, %c0_i32_0 : i32, i32
  }
  func.func @transform_5(%arg0: i32) -> (i32, i32, i32) {
    %c0_i32 = arith.constant 0 : i32
    %c0_i32_0 = arith.constant 0 : i32
    %c0_i32_1 = arith.constant 0 : i32
    return %arg0, %c0_i32, %c0_i32_0 : i32, i32, i32
  }
}

</mosaic_0001>

<llo_original>
// kernel: sa_net_forward.1
$region0: #{sa_net_forward.1}
  #allocation0 [shape = 'u32[]', space=smem, size = 0x4, offset = 0x4, fixed_abs, tag = 'smem constant byte address 0x4 - core index']
  #allocation1 [shape = 'u32[72,128]{1,0:T(1,128)}', space=vmem, size = 0x9000, scoped, tag = 'internal scratch']
  %s0 = inlined_call_operand.vmem [shape: bf16[4,32,128], index: 0, kind: input, shape index: {}]
  %s1 = inlined_call_operand.vmem [shape: bf16[336,256], index: 1, kind: input, shape index: {}]
  %s2 = inlined_call_operand.vmem [shape: bf16[1280,64], index: 2, kind: input, shape index: {}]
  %s3 = inlined_call_operand.vmem [shape: bf16[256,128], index: 3, kind: input, shape index: {}]
  %s4 = inlined_call_operand.vmem [shape: f32[8,256], index: 4, kind: input, shape index: {}]
  %s5 = inlined_call_operand.vmem [shape: f32[4,1,128], index: 5, kind: output, shape index: {}]
  %s6 = sld [smem:[#allocation0]]
  $region53: #{sa_net_forward.1} parent=0
    _
  %s8 = ssub.s32 1, %s6
  %s9 = scalar_select 0, %s8, %s6
  loop: start=0, step=1, limit=6
  $region2: #{sa_net_forward.1} parent=0 // loop_pre_header
    _
  $region3: #{sa_net_forward.1} parent=0 // loop_header
    %s11 = sphi 0, %s15
    %p12 = scmp.ge.s32.totalorder %s11, 6
    %s21 = sphi 0, %s23
    %s24 = sphi 0, %s21
    %s25 = sphi 0, %s24
    %s41 = sphi 0, %s25
    %s45 = sphi 0, %s45
    %s47 = sphi 0, %s45
    %s48 = sphi 0, %s47
    %s62 = sphi 0, %s48
    %s66 = sphi 0, %s66
    %s68 = sphi 0, %s66
    %s69 = sphi 0, %s68
    %s83 = sphi 0, %s69
    %s87 = sphi 0, %s87
    %s89 = sphi 0, %s87
    %s90 = sphi 0, %s89
    %s104 = sphi 0, %s90
    %s108 = sphi 0, %s108
    %s110 = sphi 0, %s108
    %s111 = sphi 0, %s110
    %s125 = sphi 0, %s111
    %s131 = sphi 0, %s133
    %s134 = sphi 0, %s131
    %s135 = sphi 0, %s134
    %s151 = sphi 0, %s135
  $region4: #{sa_net_forward.1} parent=0 // loop_header_branch
    %14 = sbr.rel (%p12) target = $region8
  $region5: #{sa_net_forward.1} parent=0 // loop_body
    %s16 = ssub.s32 %s11, 1
    %s17 = ssub.s32 %s11, 2
    %s18 = sadd.s32 %s11, 1
    %s19 = ssub.s32 %s11, %s18
    %p20 = scmp.eq.s32.totalorder %s19, 0
    %s22 = sadd.s32 %s21, 1
    %s23 = scalar_select %p20, %s21, %s22
    %p26 = pneg %p20
    %p27 = scmp.eq.s32.totalorder %s11, 3
    %p28 = por %p26, %p27
    %p29 = scmp.ne.s32.totalorder %s21, %s24
    %p30 = scmp.eq.s32.totalorder %s11, 0
    %p31 = por %p29, %p30
    %p32 = scmp.ne.s32.totalorder %s21, %s24
    %p33 = scmp.eq.s32.totalorder %s16, 3
    %p34 = por %p32, %p33
    %p35 = scmp.ne.s32.totalorder %s24, %s25
    %p36 = scmp.eq.s32.totalorder %s16, 0
    %p37 = por %p35, %p36
    %p38 = scmp.ne.s32.totalorder %s24, %s25
    %p39 = scmp.eq.s32.totalorder %s17, 3
    %p40 = por %p38, %p39
    %p42 = scmp.ne.s32.totalorder %s25, %s41
    %p43 = scmp.eq.s32.totalorder %s17, 0
    %p44 = por %p42, %p43
    %s46 = sadd.s32 %s45, 1
    %p49 = scmp.eq.s32.totalorder %s11, 3
    %p50 = scmp.ne.s32.totalorder %s45, %s47
    %p51 = scmp.eq.s32.totalorder %s11, 0
    %p52 = por %p50, %p51
    %p53 = scmp.ne.s32.totalorder %s45, %s47
    %p54 = scmp.eq.s32.totalorder %s16, 3
    %p55 = por %p53, %p54
    %p56 = scmp.ne.s32.totalorder %s47, %s48
    %p57 = scmp.eq.s32.totalorder %s16, 0
    %p58 = por %p56, %p57
    %p59 = scmp.ne.s32.totalorder %s47, %s48
    %p60 = scmp.eq.s32.totalorder %s17, 3
    %p61 = por %p59, %p60
    %p63 = scmp.ne.s32.totalorder %s48, %s62
    %p64 = scmp.eq.s32.totalorder %s17, 0
    %p65 = por %p63, %p64
    %s67 = sadd.s32 %s66, 1
    %p70 = scmp.eq.s32.totalorder %s11, 3
    %p71 = scmp.ne.s32.totalorder %s66, %s68
    %p72 = scmp.eq.s32.totalorder %s11, 0
    %p73 = por %p71, %p72
    %p74 = scmp.ne.s32.totalorder %s66, %s68
    %p75 = scmp.eq.s32.totalorder %s16, 3
    %p76 = por %p74, %p75
    %p77 = scmp.ne.s32.totalorder %s68, %s69
    %p78 = scmp.eq.s32.totalorder %s16, 0
    %p79 = por %p77, %p78
    %p80 = scmp.ne.s32.totalorder %s68, %s69
    %p81 = scmp.eq.s32.totalorder %s17, 3
    %p82 = por %p80, %p81
    %p84 = scmp.ne.s32.totalorder %s69, %s83
    %p85 = scmp.eq.s32.totalorder %s17, 0
    %p86 = por %p84, %p85
    %s88 = sadd.s32 %s87, 1
    %p91 = scmp.eq.s32.totalorder %s11, 3
    %p92 = scmp.ne.s32.totalorder %s87, %s89
    %p93 = scmp.eq.s32.totalorder %s11, 0
    %p94 = por %p92, %p93
    %p95 = scmp.ne.s32.totalorder %s87, %s89
    %p96 = scmp.eq.s32.totalorder %s16, 3
    %p97 = por %p95, %p96
    %p98 = scmp.ne.s32.totalorder %s89, %s90
    %p99 = scmp.eq.s32.totalorder %s16, 0
    %p100 = por %p98, %p99
    %p101 = scmp.ne.s32.totalorder %s89, %s90
    %p102 = scmp.eq.s32.totalorder %s17, 3
    %p103 = por %p101, %p102
    %p105 = scmp.ne.s32.totalorder %s90, %s104
    %p106 = scmp.eq.s32.totalorder %s17, 0
    %p107 = por %p105, %p106
    %s109 = sadd.s32 %s108, 1
    %p112 = scmp.eq.s32.totalorder %s11, 3
    %p113 = scmp.ne.s32.totalorder %s108, %s110
    %p114 = scmp.eq.s32.totalorder %s11, 0
    %p115 = por %p113, %p114
    %p116 = scmp.ne.s32.totalorder %s108, %s110
    %p117 = scmp.eq.s32.totalorder %s16, 3
    %p118 = por %p116, %p117
    %p119 = scmp.ne.s32.totalorder %s110, %s111
    %p120 = scmp.eq.s32.totalorder %s16, 0
    %p121 = por %p119, %p120
    %p122 = scmp.ne.s32.totalorder %s110, %s111
    %p123 = scmp.eq.s32.totalorder %s17, 3
    %p124 = por %p122, %p123
    %p126 = scmp.ne.s32.totalorder %s111, %s125
    %p127 = scmp.eq.s32.totalorder %s17, 0
    %p128 = por %p126, %p127
    %s129 = ssub.s32 %s11, %s18
    %p130 = scmp.eq.s32.totalorder %s129, 0
    %s132 = sadd.s32 %s131, 1
    %s133 = scalar_select %p130, %s131, %s132
    %p136 = pneg %p130
    %p137 = scmp.eq.s32.totalorder %s11, 3
    %p138 = por %p136, %p137
    %p139 = scmp.ne.s32.totalorder %s131, %s134
    %p140 = scmp.eq.s32.totalorder %s11, 0
    %p141 = por %p139, %p140
    %p142 = scmp.ne.s32.totalorder %s131, %s134
    %p143 = scmp.eq.s32.totalorder %s16, 3
    %p144 = por %p142, %p143
    %p145 = scmp.ne.s32.totalorder %s134, %s135
    %p146 = scmp.eq.s32.totalorder %s16, 0
    %p147 = por %p145, %p146
    %p148 = scmp.ne.s32.totalorder %s134, %s135
    %p149 = scmp.eq.s32.totalorder %s17, 3
    %p150 = por %p148, %p149
    %p152 = scmp.ne.s32.totalorder %s135, %s151
    %p153 = scmp.eq.s32.totalorder %s17, 0
    %p154 = por %p152, %p153
    %p155 = scmp.le.s32.totalorder 1, %s11
    %p156 = scmp.lt.s32.totalorder %s11, 5
    %p157 = pnand %p155, %p156
    %p158 = pneg %p157
    // Predicated region
    $region9: #{sa_net_forward.1} parent=5 // pred_check
      _
    $region10: #{sa_net_forward.1} parent=5 // pred_check_branch
      %160 = sbr.rel (%p157) target = $region12
    $region11: #{sa_net_forward.1} parent=5 // pred_region
      %s161 = ssub.s32 %s11, 1
      // Predicated region
      $region13: #{sa_net_forward.1} parent=11 // pred_check
        %p162 = pneg %p58
      $region14: #{sa_net_forward.1} parent=11 // pred_check_branch
        %164 = sbr.rel (%p162) target = $region16
      $region15: #{sa_net_forward.1} parent=11 // pred_region
        _
      $region16: #{sa_net_forward.1} parent=11 // pred_fallthru
        _
      // Predicated region
      $region17: #{sa_net_forward.1} parent=11 // pred_check
        %p165 = pneg %p79
      $region18: #{sa_net_forward.1} parent=11 // pred_check_branch
        %167 = sbr.rel (%p165) target = $region20
      $region19: #{sa_net_forward.1} parent=11 // pred_region
        _
      $region20: #{sa_net_forward.1} parent=11 // pred_fallthru
        _
      // Predicated region
      $region21: #{sa_net_forward.1} parent=11 // pred_check
        %p168 = pneg %p100
      $region22: #{sa_net_forward.1} parent=11 // pred_check_branch
        %170 = sbr.rel (%p168) target = $region24
      $region23: #{sa_net_forward.1} parent=11 // pred_region
        _
      $region24: #{sa_net_forward.1} parent=11 // pred_fallthru
        _
      // Predicated region
      $region25: #{sa_net_forward.1} parent=11 // pred_check
        %p171 = pneg %p121
      $region26: #{sa_net_forward.1} parent=11 // pred_check_branch
        %173 = sbr.rel (%p171) target = $region28
      $region27: #{sa_net_forward.1} parent=11 // pred_region
        _
      $region28: #{sa_net_forward.1} parent=11 // pred_fallthru
        _
    $region12: #{sa_net_forward.1} parent=5 // pred_fallthru
      _
    %p174 = scmp.lt.s32.totalorder %s11, 4
    // Predicated region
    $region29: #{sa_net_forward.1} parent=5 // pred_check
      %p175 = pneg %p174
    $region30: #{sa_net_forward.1} parent=5 // pred_check_branch
      %177 = sbr.rel (%p175) target = $region32
    $region31: #{sa_net_forward.1} parent=5 // pred_region
      // Predicated region
      $region33: #{sa_net_forward.1} parent=31 // pred_check
        %p178 = pneg %p31
      $region34: #{sa_net_forward.1} parent=31 // pred_check_branch
        %180 = sbr.rel (%p178) target = $region36
      $region35: #{sa_net_forward.1} parent=31 // pred_region
        %p181 = scmp.lt.s32.totalorder %s11, 3
        %s182 = scalar_select %p181, %s11, 3
        %s183 = smul.addr %s182, 4
        %s184 = smul.addr %s183, 4
        %s185 = scalar_lea.vmem %s0, %s184
      $region36: #{sa_net_forward.1} parent=31 // pred_fallthru
        _
    $region32: #{sa_net_forward.1} parent=5 // pred_fallthru
      _
    %p186 = scmp.le.s32.totalorder 1, %s11
    %p187 = scmp.lt.s32.totalorder %s11, 5
    %p188 = pnand %p186, %p187
    %p189 = pneg %p188
    // Predicated region
    $region37: #{sa_net_forward.1} parent=5 // pred_check
      _
    $region38: #{sa_net_forward.1} parent=5 // pred_check_branch
      %191 = sbr.rel (%p188) target = $region40
    $region39: #{sa_net_forward.1} parent=5 // pred_region
      %s192 = ssub.s32 %s11, 1
      %p193 = scmp.lt.s32.totalorder %s16, 3
      %s194 = scalar_select %p193, %s16, 3
      %s195 = smul.addr %s194, 4
      %s196 = smul.addr %s195, 4
      %s197 = scalar_lea.vmem %s0, %s196
      %p198 = pneg %p37
      %p199 = pneg %p34
      %p200 = pneg %p58
      %p201 = pneg %p55
      %p202 = pneg %p79
      %p203 = pneg %p76
      %p204 = pneg %p100
      %p205 = pneg %p97
      %p206 = pneg %p121
      %p207 = pneg %p118
      %p208 = pneg %p147
      %p209 = pneg %p144
      %p210 = scmp.lt.s32.totalorder %s16, 3
      %s211 = scalar_select %p210, %s16, 3
      %s212 = scalar_lea.vmem %s5, %s211
      %p213 = scmp.lt.s32.totalorder %s16, 3
      %s214 = scalar_select %p213, %s16, 3
      %s215 = smul.addr %s214, 4
      %s216 = smul.addr %s215, 4
      %s217 = scalar_lea.vmem %s0, %s216
      %p218 = scmp.lt.s32.totalorder %s16, 3
      %s219 = scalar_select %p218, %s16, 3
      %s220 = scalar_lea.vmem %s5, %s219
      %v222 = vld [vmem:[%s217] sm:$0xf]
      %v223 = vld [vmem:[%s217 + $0x4] sm:$0xf]
      %v224 = vld [vmem:[%s217 + $0x8] sm:$0xf]
      %v225 = vld [vmem:[%s1] sm:$0xff]
      %v226 = vld [vmem:[%s1 + $0x8] sm:$0xff]
      %v227 = vld [vmem:[%s1 + $0x10] sm:$0xff]
      %v228 = vld [vmem:[%s1 + $0x18] sm:$0xff]
      %v229 = vld [vmem:[%s1 + $0x20] sm:$0xff]
      %v230 = vld [vmem:[%s1 + $0x28] sm:$0xff]
      %v231 = vld [vmem:[%s1 + $0x30] sm:$0xff]
      %v232 = vld [vmem:[%s1 + $0x38] sm:$0xff]
      %v233 = vld [vmem:[%s1 + $0x40] sm:$0xff]
      %v234 = vld [vmem:[%s1 + $0x48] sm:$0xff]
      %v235 = vld [vmem:[%s1 + $0x50] sm:$0xff]
      %v236 = vld [vmem:[%s1 + $0x58] sm:$0xff]
      %v237 = vld [vmem:[%s1 + $0x60] sm:$0xff]
      %v238 = vld [vmem:[%s1 + $0x68] sm:$0xff]
      %v239 = vld [vmem:[%s1 + $0x70] sm:$0xff]
      %v240 = vld [vmem:[%s1 + $0x78] sm:$0xff]
      %v241 = vld [vmem:[%s1 + $0x80] sm:$0xff]
      %v242 = vld [vmem:[%s1 + $0x88] sm:$0xff]
      %v243 = vld [vmem:[%s1 + $0x90] sm:$0xff]
      %v244 = vld [vmem:[%s1 + $0x98] sm:$0xff]
      %v245 = vld [vmem:[%s1 + $0xa0] sm:$0xff]
      %v246 = vld [vmem:[%s1 + $0xa8] sm:$0xff]
      %v247 = vld [vmem:[%s1 + $0xb0] sm:$0xff]
      %v248 = vld [vmem:[%s1 + $0xb8] sm:$0xff]
      %v249 = vld [vmem:[%s1 + $0xc0] sm:$0xff]
      %v250 = vld [vmem:[%s1 + $0xc8] sm:$0xff]
      %v251 = vld [vmem:[%s1 + $0xd0] sm:$0xff]
      %v252 = vld [vmem:[%s1 + $0xd8] sm:$0xff]
      %v253 = vld [vmem:[%s1 + $0xe0] sm:$0xff]
      %v254 = vld [vmem:[%s1 + $0xe8] sm:$0xff]
      %v255 = vld [vmem:[%s1 + $0xf0] sm:$0xff]
      %v256 = vld [vmem:[%s1 + $0xf8] sm:$0xff]
      %v257 = vld [vmem:[%s1 + $0x100] sm:$0xff]
      %v258 = vld [vmem:[%s1 + $0x108] sm:$0xff]
      %v259 = vld [vmem:[%s1 + $0x110] sm:$0xff]
      %v260 = vld [vmem:[%s1 + $0x118] sm:$0xff]
      %v261 = vld [vmem:[%s1 + $0x120] sm:$0xff]
      %v262 = vld [vmem:[%s1 + $0x128] sm:$0xff]
      %v263 = vld [vmem:[%s1 + $0x130] sm:$0xff]
      %v264 = vld [vmem:[%s1 + $0x138] sm:$0xff]
      %v265 = vld [vmem:[%s1 + $0x140] sm:$0xff]
      %v266 = vld [vmem:[%s1 + $0x148] sm:$0xff]
      %v267 = vld [vmem:[%s3] sm:$0xf]
      %v268 = vld [vmem:[%s3 + $0x4] sm:$0xf]
      %v269 = vld [vmem:[%s3 + $0x8] sm:$0xf]
      %v270 = vld [vmem:[%s3 + $0xc] sm:$0xf]
      %v271 = vld [vmem:[%s3 + $0x10] sm:$0xf]
      %v272 = vld [vmem:[%s3 + $0x14] sm:$0xf]
      %v273 = vld [vmem:[%s3 + $0x18] sm:$0xf]
      %v274 = vld [vmem:[%s3 + $0x1c] sm:$0xf]
      %v275 = vld [vmem:[%s3 + $0x20] sm:$0xf]
      %v276 = vld [vmem:[%s3 + $0x24] sm:$0xf]
      %v277 = vld [vmem:[%s3 + $0x28] sm:$0xf]
      %v278 = vld [vmem:[%s3 + $0x2c] sm:$0xf]
      %v279 = vld [vmem:[%s3 + $0x30] sm:$0xf]
      %v280 = vld [vmem:[%s3 + $0x34] sm:$0xf]
      %v281 = vld [vmem:[%s3 + $0x38] sm:$0xf]
      %v282 = vld [vmem:[%s3 + $0x3c] sm:$0xf]
      %v283 = vld [vmem:[%s3 + $0x40] sm:$0xf]
      %v284 = vld [vmem:[%s3 + $0x44] sm:$0xf]
      %v285 = vld [vmem:[%s3 + $0x48] sm:$0xf]
      %v286 = vld [vmem:[%s3 + $0x4c] sm:$0xf]
      %v287 = vld [vmem:[%s3 + $0x50] sm:$0xf]
      %v288 = vld [vmem:[%s3 + $0x54] sm:$0xf]
      %v289 = vld [vmem:[%s3 + $0x58] sm:$0xf]
      %v290 = vld [vmem:[%s3 + $0x5c] sm:$0xf]
      %v291 = vld [vmem:[%s3 + $0x60] sm:$0xf]
      %v292 = vld [vmem:[%s3 + $0x64] sm:$0xf]
      %v293 = vld [vmem:[%s3 + $0x68] sm:$0xf]
      %v294 = vld [vmem:[%s3 + $0x6c] sm:$0xf]
      %v295 = vld [vmem:[%s3 + $0x70] sm:$0xf]
      %v296 = vld [vmem:[%s3 + $0x74] sm:$0xf]
      %v297 = vld [vmem:[%s3 + $0x78] sm:$0xf]
      %v298 = vld [vmem:[%s3 + $0x7c] sm:$0xf]
      %v299 = vld [vmem:[%s4] ss:$8 sm:$0x3]
      %v300 = vld [vmem:[%s4 + $0x1] ss:$0 sm:$0xff]
      %s301 = scalar_lea.vmem %s4, 2
      %v302 = vld [vmem:[%s301] ss:$8 sm:$0x3]
      %v303 = vld [vmem:[%s4 + $0x3] ss:$0 sm:$0xff]
      %v304 = vld [vmem:[%s4 + $0x4] ss:$0 sm:$0xff]
      %v305 = vld [vmem:[%s4 + $0x5] ss:$0 sm:$0xff]
      %v306 = vld [vmem:[%s4 + $0x6] ss:$0 sm:$0xff]
      %v307 = vld [vmem:[%s4 + $0x7] ss:$0 sm:$0xff]
      %v324 = vunpack.c.l.b16 %v267
      %v325 = vunpack.c.l.b16 %v268
      %v326 = vunpack.c.l.b16 %v269
      %v327 = vunpack.c.l.b16 %v270
      %v328 = vunpack.c.l.b16 %v271
      %v329 = vunpack.c.l.b16 %v272
      %v330 = vunpack.c.l.b16 %v273
      %v331 = vunpack.c.l.b16 %v274
      %v332 = vunpack.c.l.b16 %v275
      %v333 = vunpack.c.l.b16 %v276
      %v334 = vunpack.c.l.b16 %v277
      %v335 = vunpack.c.l.b16 %v278
      %v336 = vunpack.c.l.b16 %v279
      %v337 = vunpack.c.l.b16 %v280
      %v338 = vunpack.c.l.b16 %v281
      %v339 = vunpack.c.l.b16 %v282
      %v340 = vpack.c.b16 %v325, %v324
      %v341 = vpack.c.b16 %v327, %v326
      %v342 = vpack.c.b16 %v329, %v328
      %v343 = vpack.c.b16 %v331, %v330
      %v344 = vpack.c.b16 %v333, %v332
      %v345 = vpack.c.b16 %v335, %v334
      %v346 = vpack.c.b16 %v337, %v336
      %v347 = vpack.c.b16 %v339, %v338
      %356 = vmatpush.bf16.msra.mxu0 %v347
      %357 = vmatpush.bf16.msra.mxu0 %v346
      %358 = vmatpush.bf16.msra.mxu0 %v345
      %359 = vmatpush.bf16.msra.mxu0 %v344
      %360 = vmatpush.bf16.msra.mxu0 %v343
      %361 = vmatpush.bf16.msra.mxu0 %v342
      %362 = vmatpush.bf16.msra.mxu0 %v341
      %363 = vmatpush.bf16.msra.mxu0 %v340
      %364 = vmatmul.bf16.gmra.mxu0 %v224
      %v365 = vpop.f32.mrf.mxu0
      %v366 = vadd.f32 %v304, %v365
      %v367 = vpop.f32.mrf.mxu0
      %368 = vdwg.mxu0
      %v373 = vunpack.c.l.b16 %v283
      %v374 = vunpack.c.l.b16 %v284
      %v375 = vunpack.c.l.b16 %v285
      %v376 = vunpack.c.l.b16 %v286
      %v377 = vpack.c.b16 %v374, %v373
      %v378 = vpack.c.b16 %v376, %v375
      %vm381 = vcmask 261120
      %v383 = vsel %vm381, 0, 0
      %385 = vmatpush.bf16.msra.mxu0 0
      %386 = vmatpush.bf16.msra.mxu0 0
      %387 = vmatpush.bf16.msra.mxu0 0
      %388 = vmatpush.bf16.msra.mxu0 0
      %389 = vmatpush.bf16.msra.mxu0 0
      %390 = vmatpush.bf16.msra.mxu0 0
      %391 = vmatpush.bf16.msra.mxu0 %v378
      %392 = vmatpush.bf16.msra.mxu0 %v377
      %393 = vmatmul.bf16.gmra.mxu0 %v383
      %v394 = vpop.f32.mrf.mxu0
      %v395 = vadd.f32 0.0, %v394
      %v396 = vpop.f32.mrf.mxu0
      %397 = vdwg.mxu0
      %v398 = vadd.f32 %v366, %v395
      %v399 = vxor.u32 %v398, 2147483648
      %v400 = vmul.f32 %v399, 1.442695
      %v401 = vpow.pop %v400
      %v402 = vadd.f32 %v401, 1.0
      %v403 = vrcp.pop %v402
      %v404 = vmul.f32 %v402, %v403
      %v405 = vsub.f32 1.0, %v404
      %v406 = vmul.f32 %v403, %v405
      %v407 = vadd.f32 %v403, %v406
      %vm408 = vweird.f32 %v402
      %vm409 = vweird.f32 %v403
      %vm410 = vmor %vm408, %vm409
      %v411 = vsel %vm410, %v403, %v407
      %v412 = vand.u32 2147483647, %v402
      %vm413 = vcmp.eq.f32.partialorder %v412, 8.507059e+37
      %v414 = vand.u32 %v402, 2147483648
      %v415 = vor.u32 1.1754944e-38, %v414
      %v416 = vsel %vm413, %v415, %v411
      %v417 = vmul.f32 1.0, %v416
      %v418 = vtanh.pop %v398
      %v419 = vmul.f32 %v417, 0.0
      %421 = vrot.lane.b32.xlu0 %v418, 64
      %v422 = vpop.permute.xlu0 %421
      %v424 = vmul.f32 %v417, %v422
      %426 = vrot.lane.b32.xlu0 %v424, 32
      %v427 = vpop.permute.xlu0 %426
      %v429 = vadd.f32 %v419, %v427
      %v430 = vtanh.pop %v429
      %432 = vrot.lane.b32.xlu0 %v430, 64
      %v433 = vpop.permute.xlu0 %432
      %v435 = vmul.f32 %v417, %v433
      %v436 = vadd.f32 %v435, 0.0
      %v437 = vpack.c.bf16 %v435, %v435
      %439 = vrot.lane.b32.xlu0 %v437, 32
      %v440 = vpop.permute.xlu0 %439
      %v442 = vsel %vm381, %v440, 0
      %444 = vmatpush.bf16.msra.mxu0 0
      %445 = vmatpush.bf16.msra.mxu0 0
      %446 = vmatpush.bf16.msra.mxu0 0
      %447 = vmatpush.bf16.msra.mxu0 0
      %448 = vmatpush.bf16.msra.mxu0 0
      %449 = vmatpush.bf16.msra.mxu0 0
      %450 = vmatpush.bf16.msra.mxu0 %v378
      %451 = vmatpush.bf16.msra.mxu0 %v377
      %452 = vmatmul.bf16.gmra.mxu0 %v442
      %v453 = vpop.f32.mrf.mxu0
      %v454 = vadd.f32 0.0, %v453
      %v455 = vpop.f32.mrf.mxu0
      %456 = vdwg.mxu0
      %v458 = vrot.slane %v454, 7
      %v460 = vadd.f32 %v366, %v458
      %v461 = vxor.u32 %v460, 2147483648
      %v462 = vmul.f32 %v461, 1.442695
      %v463 = vpow.pop %v462
      %v464 = vadd.f32 %v463, 1.0
      %v465 = vrcp.pop %v464
      %v466 = vmul.f32 %v464, %v465
      %v467 = vsub.f32 1.0, %v466
      %v468 = vmul.f32 %v465, %v467
      %v469 = vadd.f32 %v465, %v468
      %vm470 = vweird.f32 %v464
      %vm471 = vweird.f32 %v465
      %vm472 = vmor %vm470, %vm471
      %v473 = vsel %vm472, %v465, %v469
      %v474 = vand.u32 2147483647, %v464
      %vm475 = vcmp.eq.f32.partialorder %v474, 8.507059e+37
      %v476 = vand.u32 %v464, 2147483648
      %v477 = vor.u32 1.1754944e-38, %v476
      %v478 = vsel %vm475, %v477, %v473
      %v479 = vmul.f32 1.0, %v478
      %v480 = vtanh.pop %v460
      %v482 = vrot.slane %v429, 7
      %v484 = vmul.f32 %v479, %v482
      %486 = vrot.lane.b32.xlu0 %v480, 64
      %v487 = vpop.permute.xlu0 %486
      %v489 = vmul.f32 %v479, %v487
      %491 = vrot.lane.b32.xlu0 %v489, 32
      %v492 = vpop.permute.xlu0 %491
      %v494 = vadd.f32 %v484, %v492
      %v495 = vtanh.pop %v494
      %497 = vrot.lane.b32.xlu0 %v495, 64
      %v498 = vpop.permute.xlu0 %497
      %v500 = vmul.f32 %v479, %v498
      %v502 = vrot.slane %v500, 1
      %v504 = vadd.f32 %v436, %v502
      %v505 = vpack.c.bf16 %v500, %v500
      %v507 = vshrl.u32 %v505, 16
      %509 = vrot.lane.b32.xlu0 %v507, 32
      %v510 = vpop.permute.xlu0 %509
      %v512 = vsel %vm381, %v510, 0
      %514 = vmatpush.bf16.msra.mxu0 0
      %515 = vmatpush.bf16.msra.mxu0 0
      %516 = vmatpush.bf16.msra.mxu0 0
      %517 = vmatpush.bf16.msra.mxu0 0
      %518 = vmatpush.bf16.msra.mxu0 0
      %519 = vmatpush.bf16.msra.mxu0 0
      %520 = vmatpush.bf16.msra.mxu0 %v378
      %521 = vmatpush.bf16.msra.mxu0 %v377
      %522 = vmatmul.bf16.gmra.mxu0 %v512
      %v523 = vpop.f32.mrf.mxu0
      %v524 = vadd.f32 0.0, %v523
      %v525 = vpop.f32.mrf.mxu0
      %526 = vdwg.mxu0
      %v528 = vrot.slane %v524, 6
      %v530 = vadd.f32 %v366, %v528
      %v531 = vxor.u32 %v530, 2147483648
      %v532 = vmul.f32 %v531, 1.442695
      %v533 = vpow.pop %v532
      %v534 = vadd.f32 %v533, 1.0
      %v535 = vrcp.pop %v534
      %v536 = vmul.f32 %v534, %v535
      %v537 = vsub.f32 1.0, %v536
      %v538 = vmul.f32 %v535, %v537
      %v539 = vadd.f32 %v535, %v538
      %vm540 = vweird.f32 %v534
      %vm541 = vweird.f32 %v535
      %vm542 = vmor %vm540, %vm541
      %v543 = vsel %vm542, %v535, %v539
      %v544 = vand.u32 2147483647, %v534
      %vm545 = vcmp.eq.f32.partialorder %v544, 8.507059e+37
      %v546 = vand.u32 %v534, 2147483648
      %v547 = vor.u32 1.1754944e-38, %v546
      %v548 = vsel %vm545, %v547, %v543
      %v549 = vmul.f32 1.0, %v548
      %v550 = vtanh.pop %v530
      %v552 = vrot.slane %v494, 7
      %v554 = vmul.f32 %v549, %v552
      %556 = vrot.lane.b32.xlu0 %v550, 64
      %v557 = vpop.permute.xlu0 %556
      %v559 = vmul.f32 %v549, %v557
      %561 = vrot.lane.b32.xlu0 %v559, 32
      %v562 = vpop.permute.xlu0 %561
      %v564 = vadd.f32 %v554, %v562
      %v565 = vtanh.pop %v564
      %567 = vrot.lane.b32.xlu0 %v565, 64
      %v568 = vpop.permute.xlu0 %567
      %v570 = vmul.f32 %v549, %v568
      %v572 = vrot.slane %v570, 2
      %v574 = vadd.f32 %v504, %v572
      %v575 = vpack.c.bf16 %v570, %v570
      %v577 = vrot.slane %v575, 1
      %578 = vrot.lane.b32.xlu0 %v577, 32
      %v579 = vpop.permute.xlu0 %578
      %v581 = vsel %vm381, %v579, 0
      %583 = vmatpush.bf16.msra.mxu0 0
      %584 = vmatpush.bf16.msra.mxu0 0
      %585 = vmatpush.bf16.msra.mxu0 0
      %586 = vmatpush.bf16.msra.mxu0 0
      %587 = vmatpush.bf16.msra.mxu0 0
      %588 = vmatpush.bf16.msra.mxu0 0
      %589 = vmatpush.bf16.msra.mxu0 %v378
      %590 = vmatpush.bf16.msra.mxu0 %v377
      %591 = vmatmul.bf16.gmra.mxu0 %v581
      %v592 = vpop.f32.mrf.mxu0
      %v593 = vadd.f32 0.0, %v592
      %v594 = vpop.f32.mrf.mxu0
      %595 = vdwg.mxu0
      %v597 = vrot.slane %v593, 5
      %v599 = vadd.f32 %v366, %v597
      %v600 = vxor.u32 %v599, 2147483648
      %v601 = vmul.f32 %v600, 1.442695
      %v602 = vpow.pop %v601
      %v603 = vadd.f32 %v602, 1.0
      %v604 = vrcp.pop %v603
      %v605 = vmul.f32 %v603, %v604
      %v606 = vsub.f32 1.0, %v605
      %v607 = vmul.f32 %v604, %v606
      %v608 = vadd.f32 %v604, %v607
      %vm609 = vweird.f32 %v603
      %vm610 = vweird.f32 %v604
      %vm611 = vmor %vm609, %vm610
      %v612 = vsel %vm611, %v604, %v608
      %v613 = vand.u32 2147483647, %v603
      %vm614 = vcmp.eq.f32.partialorder %v613, 8.507059e+37
      %v615 = vand.u32 %v603, 2147483648
      %v616 = vor.u32 1.1754944e-38, %v615
      %v617 = vsel %vm614, %v616, %v612
      %v618 = vmul.f32 1.0, %v617
      %v619 = vtanh.pop %v599
      %v621 = vrot.slane %v564, 7
      %v623 = vmul.f32 %v618, %v621
      %625 = vrot.lane.b32.xlu0 %v619, 64
      %v626 = vpop.permute.xlu0 %625
      %v628 = vmul.f32 %v618, %v626
      %630 = vrot.lane.b32.xlu0 %v628, 32
      %v631 = vpop.permute.xlu0 %630
      %v633 = vadd.f32 %v623, %v631
      %v634 = vtanh.pop %v633
      %636 = vrot.lane.b32.xlu0 %v634, 64
      %v637 = vpop.permute.xlu0 %636
      %v639 = vmul.f32 %v618, %v637
      %v641 = vrot.slane %v639, 3
      %v643 = vadd.f32 %v574, %v641
      %v644 = vpack.c.bf16 %v639, %v639
      %v646 = vshrl.u32 %v644, 16
      %v648 = vrot.slane %v646, 1
      %649 = vrot.lane.b32.xlu0 %v648, 32
      %v650 = vpop.permute.xlu0 %649
      %v652 = vsel %vm381, %v650, 0
      %654 = vmatpush.bf16.msra.mxu0 0
      %655 = vmatpush.bf16.msra.mxu0 0
      %656 = vmatpush.bf16.msra.mxu0 0
      %657 = vmatpush.bf16.msra.mxu0 0
      %658 = vmatpush.bf16.msra.mxu0 0
      %659 = vmatpush.bf16.msra.mxu0 0
      %660 = vmatpush.bf16.msra.mxu0 %v378
      %661 = vmatpush.bf16.msra.mxu0 %v377
      %662 = vmatmul.bf16.gmra.mxu0 %v652
      %v663 = vpop.f32.mrf.mxu0
      %v664 = vadd.f32 0.0, %v663
      %v665 = vpop.f32.mrf.mxu0
      %666 = vdwg.mxu0
      %v668 = vrot.slane %v664, 4
      %v670 = vadd.f32 %v366, %v668
      %v671 = vxor.u32 %v670, 2147483648
      %v672 = vmul.f32 %v671, 1.442695
      %v673 = vpow.pop %v672
      %v674 = vadd.f32 %v673, 1.0
      %v675 = vrcp.pop %v674
      %v676 = vmul.f32 %v674, %v675
      %v677 = vsub.f32 1.0, %v676
      %v678 = vmul.f32 %v675, %v677
      %v679 = vadd.f32 %v675, %v678
      %vm680 = vweird.f32 %v674
      %vm681 = vweird.f32 %v675
      %vm682 = vmor %vm680, %vm681
      %v683 = vsel %vm682, %v675, %v679
      %v684 = vand.u32 2147483647, %v674
      %vm685 = vcmp.eq.f32.partialorder %v684, 8.507059e+37
      %v686 = vand.u32 %v674, 2147483648
      %v687 = vor.u32 1.1754944e-38, %v686
      %v688 = vsel %vm685, %v687, %v683
      %v689 = vmul.f32 1.0, %v688
      %v690 = vtanh.pop %v670
      %v692 = vrot.slane %v633, 7
      %v694 = vmul.f32 %v689, %v692
      %696 = vrot.lane.b32.xlu0 %v690, 64
      %v697 = vpop.permute.xlu0 %696
      %v699 = vmul.f32 %v689, %v697
      %701 = vrot.lane.b32.xlu0 %v699, 32
      %v702 = vpop.permute.xlu0 %701
      %v704 = vadd.f32 %v694, %v702
      %v705 = vtanh.pop %v704
      %707 = vrot.lane.b32.xlu0 %v705, 64
      %v708 = vpop.permute.xlu0 %707
      %v710 = vmul.f32 %v689, %v708
      %v712 = vrot.slane %v710, 4
      %v714 = vadd.f32 %v643, %v712
      %v715 = vpack.c.bf16 %v710, %v710
      %v717 = vrot.slane %v715, 2
      %718 = vrot.lane.b32.xlu0 %v717, 32
      %v719 = vpop.permute.xlu0 %718
      %v721 = vsel %vm381, %v719, 0
      %723 = vmatpush.bf16.msra.mxu0 0
      %724 = vmatpush.bf16.msra.mxu0 0
      %725 = vmatpush.bf16.msra.mxu0 0
      %726 = vmatpush.bf16.msra.mxu0 0
      %727 = vmatpush.bf16.msra.mxu0 0
      %728 = vmatpush.bf16.msra.mxu0 0
      %729 = vmatpush.bf16.msra.mxu0 %v378
      %730 = vmatpush.bf16.msra.mxu0 %v377
      %731 = vmatmul.bf16.gmra.mxu0 %v721
      %v732 = vpop.f32.mrf.mxu0
      %v733 = vadd.f32 0.0, %v732
      %v734 = vpop.f32.mrf.mxu0
      %735 = vdwg.mxu0
      %v737 = vrot.slane %v733, 3
      %v739 = vadd.f32 %v366, %v737
      %v740 = vxor.u32 %v739, 2147483648
      %v741 = vmul.f32 %v740, 1.442695
      %v742 = vpow.pop %v741
      %v743 = vadd.f32 %v742, 1.0
      %v744 = vrcp.pop %v743
      %v745 = vmul.f32 %v743, %v744
      %v746 = vsub.f32 1.0, %v745
      %v747 = vmul.f32 %v744, %v746
      %v748 = vadd.f32 %v744, %v747
      %vm749 = vweird.f32 %v743
      %vm750 = vweird.f32 %v744
      %vm751 = vmor %vm749, %vm750
      %v752 = vsel %vm751, %v744, %v748
      %v753 = vand.u32 2147483647, %v743
      %vm754 = vcmp.eq.f32.partialorder %v753, 8.507059e+37
      %v755 = vand.u32 %v743, 2147483648
      %v756 = vor.u32 1.1754944e-38, %v755
      %v757 = vsel %vm754, %v756, %v752
      %v758 = vmul.f32 1.0, %v757
      %v759 = vtanh.pop %v739
      %v761 = vrot.slane %v704, 7
      %v763 = vmul.f32 %v758, %v761
      %765 = vrot.lane.b32.xlu0 %v759, 64
      %v766 = vpop.permute.xlu0 %765
      %v768 = vmul.f32 %v758, %v766
      %770 = vrot.lane.b32.xlu0 %v768, 32
      %v771 = vpop.permute.xlu0 %770
      %v773 = vadd.f32 %v763, %v771
      %v774 = vtanh.pop %v773
      %776 = vrot.lane.b32.xlu0 %v774, 64
      %v777 = vpop.permute.xlu0 %776
      %v779 = vmul.f32 %v758, %v777
      %v781 = vrot.slane %v779, 5
      %v783 = vadd.f32 %v714, %v781
      %v784 = vpack.c.bf16 %v779, %v779
      %v786 = vshrl.u32 %v784, 16
      %v788 = vrot.slane %v786, 2
      %789 = vrot.lane.b32.xlu0 %v788, 32
      %v790 = vpop.permute.xlu0 %789
      %v792 = vsel %vm381, %v790, 0
      %794 = vmatpush.bf16.msra.mxu0 0
      %795 = vmatpush.bf16.msra.mxu0 0
      %796 = vmatpush.bf16.msra.mxu0 0
      %797 = vmatpush.bf16.msra.mxu0 0
      %798 = vmatpush.bf16.msra.mxu0 0
      %799 = vmatpush.bf16.msra.mxu0 0
      %800 = vmatpush.bf16.msra.mxu0 %v378
      %801 = vmatpush.bf16.msra.mxu0 %v377
      %802 = vmatmul.bf16.gmra.mxu0 %v792
      %v803 = vpop.f32.mrf.mxu0
      %v804 = vadd.f32 0.0, %v803
      %v805 = vpop.f32.mrf.mxu0
      %806 = vdwg.mxu0
      %v808 = vrot.slane %v804, 2
      %v810 = vadd.f32 %v366, %v808
      %v811 = vxor.u32 %v810, 2147483648
      %v812 = vmul.f32 %v811, 1.442695
      %v813 = vpow.pop %v812
      %v814 = vadd.f32 %v813, 1.0
      %v815 = vrcp.pop %v814
      %v816 = vmul.f32 %v814, %v815
      %v817 = vsub.f32 1.0, %v816
      %v818 = vmul.f32 %v815, %v817
      %v819 = vadd.f32 %v815, %v818
      %vm820 = vweird.f32 %v814
      %vm821 = vweird.f32 %v815
      %vm822 = vmor %vm820, %vm821
      %v823 = vsel %vm822, %v815, %v819
      %v824 = vand.u32 2147483647, %v814
      %vm825 = vcmp.eq.f32.partialorder %v824, 8.507059e+37
      %v826 = vand.u32 %v814, 2147483648
      %v827 = vor.u32 1.1754944e-38, %v826
      %v828 = vsel %vm825, %v827, %v823
      %v829 = vmul.f32 1.0, %v828
      %v830 = vtanh.pop %v810
      %v832 = vrot.slane %v773, 7
      %v834 = vmul.f32 %v829, %v832
      %836 = vrot.lane.b32.xlu0 %v830, 64
      %v837 = vpop.permute.xlu0 %836
      %v839 = vmul.f32 %v829, %v837
      %841 = vrot.lane.b32.xlu0 %v839, 32
      %v842 = vpop.permute.xlu0 %841
      %v844 = vadd.f32 %v834, %v842
      %v845 = vtanh.pop %v844
      %847 = vrot.lane.b32.xlu0 %v845, 64
      %v848 = vpop.permute.xlu0 %847
      %v850 = vmul.f32 %v829, %v848
      %v852 = vrot.slane %v850, 6
      %v854 = vadd.f32 %v783, %v852
      %v855 = vpack.c.bf16 %v850, %v850
      %v857 = vrot.slane %v855, 3
      %858 = vrot.lane.b32.xlu0 %v857, 32
      %v859 = vpop.permute.xlu0 %858
      %v861 = vsel %vm381, %v859, 0
      %863 = vmatpush.bf16.msra.mxu0 0
      %864 = vmatpush.bf16.msra.mxu0 0
      %865 = vmatpush.bf16.msra.mxu0 0
      %866 = vmatpush.bf16.msra.mxu0 0
      %867 = vmatpush.bf16.msra.mxu0 0
      %868 = vmatpush.bf16.msra.mxu0 0
      %869 = vmatpush.bf16.msra.mxu0 %v378
      %870 = vmatpush.bf16.msra.mxu0 %v377
      %871 = vmatmul.bf16.gmra.mxu0 %v861
      %v872 = vpop.f32.mrf.mxu0
      %v873 = vadd.f32 0.0, %v872
      %v874 = vpop.f32.mrf.mxu0
      %875 = vdwg.mxu0
      %v877 = vrot.slane %v873, 1
      %v879 = vadd.f32 %v366, %v877
      %v880 = vxor.u32 %v879, 2147483648
      %v881 = vmul.f32 %v880, 1.442695
      %v882 = vpow.pop %v881
      %v883 = vadd.f32 %v882, 1.0
      %v884 = vrcp.pop %v883
      %v885 = vmul.f32 %v883, %v884
      %v886 = vsub.f32 1.0, %v885
      %v887 = vmul.f32 %v884, %v886
      %v888 = vadd.f32 %v884, %v887
      %vm889 = vweird.f32 %v883
      %vm890 = vweird.f32 %v884
      %vm891 = vmor %vm889, %vm890
      %v892 = vsel %vm891, %v884, %v888
      %v893 = vand.u32 2147483647, %v883
      %vm894 = vcmp.eq.f32.partialorder %v893, 8.507059e+37
      %v895 = vand.u32 %v883, 2147483648
      %v896 = vor.u32 1.1754944e-38, %v895
      %v897 = vsel %vm894, %v896, %v892
      %v898 = vmul.f32 1.0, %v897
      %v899 = vtanh.pop %v879
      %v901 = vrot.slane %v844, 7
      %v903 = vmul.f32 %v898, %v901
      %905 = vrot.lane.b32.xlu0 %v899, 64
      %v906 = vpop.permute.xlu0 %905
      %v908 = vmul.f32 %v898, %v906
      %910 = vrot.lane.b32.xlu0 %v908, 32
      %v911 = vpop.permute.xlu0 %910
      %v913 = vadd.f32 %v903, %v911
      %v914 = vtanh.pop %v913
      %916 = vrot.lane.b32.xlu0 %v914, 64
      %v917 = vpop.permute.xlu0 %916
      %v919 = vmul.f32 %v898, %v917
      %v921 = vrot.slane %v919, 7
      %v923 = vadd.f32 %v854, %v921
      %v924 = vmul.f32 %v923, 0.125
      %v926 = vperm.slane %v299, 0
      %v927 = vperm.slane %v299, 1
      %v932 = vunpack.c.l.b16 %v222
      %v933 = vunpack.c.l.b16 %v223
      %v934 = vpack.c.b16 %v933, %v932
      %v952 = vunpack.c.l.b16 %v225
      %v953 = vunpack.c.h.b16 %v225
      %v954 = vunpack.c.l.b16 %v226
      %v955 = vunpack.c.h.b16 %v226
      %v956 = vunpack.c.l.b16 %v227
      %v957 = vunpack.c.h.b16 %v227
      %v958 = vunpack.c.l.b16 %v228
      %v959 = vunpack.c.h.b16 %v228
      %v960 = vunpack.c.l.b16 %v229
      %v961 = vunpack.c.h.b16 %v229
      %v962 = vunpack.c.l.b16 %v230
      %v963 = vunpack.c.h.b16 %v230
      %v964 = vunpack.c.l.b16 %v231
      %v965 = vunpack.c.h.b16 %v231
      %v966 = vunpack.c.l.b16 %v232
      %v967 = vunpack.c.h.b16 %v232
      %v968 = vunpack.c.l.b16 %v233
      %v969 = vunpack.c.h.b16 %v233
      %v970 = vunpack.c.l.b16 %v234
      %v971 = vunpack.c.h.b16 %v234
      %v972 = vunpack.c.l.b16 %v235
      %v973 = vunpack.c.h.b16 %v235
      %v974 = vunpack.c.l.b16 %v236
      %v975 = vunpack.c.h.b16 %v236
      %v976 = vunpack.c.l.b16 %v237
      %v977 = vunpack.c.h.b16 %v237
      %v978 = vunpack.c.l.b16 %v238
      %v979 = vunpack.c.h.b16 %v238
      %v980 = vunpack.c.l.b16 %v239
      %v981 = vunpack.c.h.b16 %v239
      %v982 = vunpack.c.l.b16 %v240
      %v983 = vunpack.c.h.b16 %v240
      %v984 = vpack.c.b16 %v954, %v952
      %v985 = vpack.c.b16 %v955, %v953
      %v986 = vpack.c.b16 %v958, %v956
      %v987 = vpack.c.b16 %v959, %v957
      %v988 = vpack.c.b16 %v962, %v960
      %v989 = vpack.c.b16 %v963, %v961
      %v990 = vpack.c.b16 %v966, %v964
      %v991 = vpack.c.b16 %v967, %v965
      %v992 = vpack.c.b16 %v970, %v968
      %v993 = vpack.c.b16 %v971, %v969
      %v994 = vpack.c.b16 %v974, %v972
      %v995 = vpack.c.b16 %v975, %v973
      %v996 = vpack.c.b16 %v978, %v976
      %v997 = vpack.c.b16 %v979, %v977
      %v998 = vpack.c.b16 %v982, %v980
      %v999 = vpack.c.b16 %v983, %v981
      %1016 = vmatpush.bf16.msra.mxu0 %v998
      %1017 = vmatpush.bf16.msra.mxu0 %v996
      %1018 = vmatpush.bf16.msra.mxu0 %v994
      %1019 = vmatpush.bf16.msra.mxu0 %v992
      %1020 = vmatpush.bf16.msra.mxu0 %v990
      %1021 = vmatpush.bf16.msra.mxu0 %v988
      %1022 = vmatpush.bf16.msra.mxu0 %v986
      %1023 = vmatpush.bf16.msra.mxu0 %v984
      %1024 = vmatmul.bf16.gmra.mxu0 %v934
      %v1025 = vpop.f32.mrf.mxu0
      %v1026 = vadd.f32 %v926, %v1025
      %v1027 = vpop.f32.mrf.mxu0
      %v1028 = vadd.f32 %v926, %v1027
      %1029 = vdwg.mxu0
      %1030 = vmatpush.bf16.msra.mxu0 %v999
      %1031 = vmatpush.bf16.msra.mxu0 %v997
      %1032 = vmatpush.bf16.msra.mxu0 %v995
      %1033 = vmatpush.bf16.msra.mxu0 %v993
      %1034 = vmatpush.bf16.msra.mxu0 %v991
      %1035 = vmatpush.bf16.msra.mxu0 %v989
      %1036 = vmatpush.bf16.msra.mxu0 %v987
      %1037 = vmatpush.bf16.msra.mxu0 %v985
      %1038 = vmatmul.bf16.gmra.mxu0 %v934
      %v1039 = vpop.f32.mrf.mxu0
      %v1040 = vadd.f32 %v927, %v1039
      %v1041 = vpop.f32.mrf.mxu0
      %v1042 = vadd.f32 %v927, %v1041
      %1043 = vdwg.mxu0
      %v1044 = vmax.f32 %v1026, %v1028
      %v1045 = vmax.f32 %v1040, %v1042
      %v1046 = vxor.u32 %v1044, 2147483648
      %v1047 = vxor.u32 %v1045, 2147483648
      %v1048 = vmul.f32 %v1046, 1.442695
      %v1049 = vpow.pop %v1048
      %v1050 = vmul.f32 %v1047, 1.442695
      %v1051 = vpow.pop %v1050
      %v1052 = vadd.f32 %v1049, 1.0
      %v1053 = vadd.f32 %v1051, 1.0
      %v1054 = vrcp.pop %v1052
      %v1055 = vmul.f32 %v1052, %v1054
      %v1056 = vsub.f32 1.0, %v1055
      %v1057 = vmul.f32 %v1054, %v1056
      %v1058 = vadd.f32 %v1054, %v1057
      %vm1059 = vweird.f32 %v1052
      %vm1060 = vweird.f32 %v1054
      %vm1061 = vmor %vm1059, %vm1060
      %v1062 = vsel %vm1061, %v1054, %v1058
      %v1063 = vand.u32 2147483647, %v1052
      %vm1064 = vcmp.eq.f32.partialorder %v1063, 8.507059e+37
      %v1065 = vand.u32 %v1052, 2147483648
      %v1066 = vor.u32 1.1754944e-38, %v1065
      %v1067 = vsel %vm1064, %v1066, %v1062
      %v1068 = vmul.f32 1.0, %v1067
      %v1069 = vrcp.pop %v1053
      %v1070 = vmul.f32 %v1053, %v1069
      %v1071 = vsub.f32 1.0, %v1070
      %v1072 = vmul.f32 %v1069, %v1071
      %v1073 = vadd.f32 %v1069, %v1072
      %vm1074 = vweird.f32 %v1053
      %vm1075 = vweird.f32 %v1069
      %vm1076 = vmor %vm1074, %vm1075
      %v1077 = vsel %vm1076, %v1069, %v1073
      %v1078 = vand.u32 2147483647, %v1053
      %vm1079 = vcmp.eq.f32.partialorder %v1078, 8.507059e+37
      %v1080 = vand.u32 %v1053, 2147483648
      %v1081 = vor.u32 1.1754944e-38, %v1080
      %v1082 = vsel %vm1079, %v1081, %v1077
      %v1083 = vmul.f32 1.0, %v1082
      %v1086 = vrot.slane %v1068, 6
      %v1087 = vrot.slane %v1083, 6
      %vm1090 = vcmask 1041408
      %v1091 = vsel %vm1090, 0.0, %v1086
      %v1092 = vsel %vm1090, 0.0, %v1087
      %v1093 = vsel %vm1090, %v1086, 0.0
      %v1094 = vsel %vm1090, %v1087, 0.0
      %v1095 = vpack.c.bf16 %v1092, %v1091
      %v1096 = vpack.c.bf16 %v1094, %v1093
      %v1098 = vunpack.c.l.b16 %v1095
      %v1099 = vunpack.c.h.b16 %v1095
      %v1100 = vpack.c.b16 %v1098, %v1098
      %v1101 = vpack.c.b16 %v1099, %v1099
      %v1105 = vunpack.c.l.b16 %v1096
      %v1106 = vunpack.c.h.b16 %v1096
      %v1107 = vpack.c.b16 %v1105, %v1098
      %v1108 = vpack.c.b16 %v1106, %v1099
      %v1110 = vshrl.u32 %v1107, 16
      %v1112 = vshll.u32 %v1107, 16
      %v1114 = vrot.slane %v1112, 1
      %v1115 = vor.u32 %v1110, %v1114
      %v1117 = vshrl.u32 %v1108, 16
      %v1119 = vshll.u32 %v1108, 16
      %v1121 = vrot.slane %v1119, 1
      %v1122 = vor.u32 %v1117, %v1121
      %v1125 = vrot.slane %v1107, 1
      %v1126 = vrot.slane %v1108, 1
      %v1129 = vrot.slane %v1110, 1
      %v1130 = vrot.slane %v1112, 2
      %v1131 = vor.u32 %v1129, %v1130
      %v1132 = vrot.slane %v1117, 1
      %v1133 = vrot.slane %v1119, 2
      %v1134 = vor.u32 %v1132, %v1133
      %v1137 = vrot.slane %v1107, 2
      %v1138 = vrot.slane %v1108, 2
      %v1141 = vld [vmem:[%s2] sm:$0xf]
      %v1142 = vld [vmem:[%s2 + $0x4] sm:$0xf]
      %v1143 = vld [vmem:[%s2 + $0x8] sm:$0xf]
      %v1144 = vld [vmem:[%s2 + $0xc] sm:$0xf]
      %v1145 = vld [vmem:[%s2 + $0x10] sm:$0xf]
      %v1146 = vld [vmem:[%s2 + $0x14] sm:$0xf]
      %v1147 = vld [vmem:[%s2 + $0x18] sm:$0xf]
      %v1148 = vld [vmem:[%s2 + $0x1c] sm:$0xf]
      %v1149 = vld [vmem:[%s2 + $0x20] sm:$0xf]
      %v1150 = vld [vmem:[%s2 + $0x24] sm:$0xf]
      %v1151 = vld [vmem:[%s2 + $0x28] sm:$0xf]
      %v1152 = vld [vmem:[%s2 + $0x2c] sm:$0xf]
      %v1153 = vld [vmem:[%s2 + $0x30] sm:$0xf]
      %v1154 = vld [vmem:[%s2 + $0x34] sm:$0xf]
      %v1155 = vld [vmem:[%s2 + $0x38] sm:$0xf]
      %v1156 = vld [vmem:[%s2 + $0x3c] sm:$0xf]
      %v1157 = vld [vmem:[%s2 + $0x40] sm:$0xf]
      %v1158 = vld [vmem:[%s2 + $0x44] sm:$0xf]
      %v1159 = vld [vmem:[%s2 + $0x48] sm:$0xf]
      %v1160 = vld [vmem:[%s2 + $0x4c] sm:$0xf]
      %v1161 = vld [vmem:[%s2 + $0x50] sm:$0xf]
      %v1162 = vld [vmem:[%s2 + $0x54] sm:$0xf]
      %v1163 = vld [vmem:[%s2 + $0x58] sm:$0xf]
      %v1164 = vld [vmem:[%s2 + $0x5c] sm:$0xf]
      %v1165 = vld [vmem:[%s2 + $0x60] sm:$0xf]
      %v1166 = vld [vmem:[%s2 + $0x64] sm:$0xf]
      %v1167 = vld [vmem:[%s2 + $0x68] sm:$0xf]
      %v1168 = vld [vmem:[%s2 + $0x6c] sm:$0xf]
      %v1169 = vld [vmem:[%s2 + $0x70] sm:$0xf]
      %v1170 = vld [vmem:[%s2 + $0x74] sm:$0xf]
      %v1171 = vld [vmem:[%s2 + $0x78] sm:$0xf]
      %v1172 = vld [vmem:[%s2 + $0x7c] sm:$0xf]
      %v1173 = vld [vmem:[%s2 + $0x80] sm:$0xf]
      %v1174 = vld [vmem:[%s2 + $0x84] sm:$0xf]
      %v1175 = vld [vmem:[%s2 + $0x88] sm:$0xf]
      %v1176 = vld [vmem:[%s2 + $0x8c] sm:$0xf]
      %v1177 = vld [vmem:[%s2 + $0x90] sm:$0xf]
      %v1178 = vld [vmem:[%s2 + $0x94] sm:$0xf]
      %v1179 = vld [vmem:[%s2 + $0x98] sm:$0xf]
      %v1180 = vld [vmem:[%s2 + $0x9c] sm:$0xf]
      %v1181 = vld [vmem:[%s2 + $0xa0] sm:$0xf]
      %v1182 = vld [vmem:[%s2 + $0xa4] sm:$0xf]
      %v1183 = vld [vmem:[%s2 + $0xa8] sm:$0xf]
      %v1184 = vld [vmem:[%s2 + $0xac] sm:$0xf]
      %v1185 = vld [vmem:[%s2 + $0xb0] sm:$0xf]
      %v1186 = vld [vmem:[%s2 + $0xb4] sm:$0xf]
      %v1187 = vld [vmem:[%s2 + $0xb8] sm:$0xf]
      %v1188 = vld [vmem:[%s2 + $0xbc] sm:$0xf]
      %v1189 = vld [vmem:[%s2 + $0xc0] sm:$0xf]
      %v1190 = vld [vmem:[%s2 + $0xc4] sm:$0xf]
      %v1191 = vld [vmem:[%s2 + $0xc8] sm:$0xf]
      %v1192 = vld [vmem:[%s2 + $0xcc] sm:$0xf]
      %v1193 = vld [vmem:[%s2 + $0xd0] sm:$0xf]
      %v1194 = vld [vmem:[%s2 + $0xd4] sm:$0xf]
      %v1195 = vld [vmem:[%s2 + $0xd8] sm:$0xf]
      %v1196 = vld [vmem:[%s2 + $0xdc] sm:$0xf]
      %v1197 = vld [vmem:[%s2 + $0xe0] sm:$0xf]
      %v1198 = vld [vmem:[%s2 + $0xe4] sm:$0xf]
      %v1199 = vld [vmem:[%s2 + $0xe8] sm:$0xf]
      %v1200 = vld [vmem:[%s2 + $0xec] sm:$0xf]
      %v1201 = vld [vmem:[%s2 + $0xf0] sm:$0xf]
      %v1202 = vld [vmem:[%s2 + $0xf4] sm:$0xf]
      %v1203 = vld [vmem:[%s2 + $0xf8] sm:$0xf]
      %v1204 = vld [vmem:[%s2 + $0xfc] sm:$0xf]
      %v1205 = vld [vmem:[%s2 + $0x100] sm:$0xf]
      %v1206 = vld [vmem:[%s2 + $0x104] sm:$0xf]
      %v1207 = vld [vmem:[%s2 + $0x108] sm:$0xf]
      %v1208 = vld [vmem:[%s2 + $0x10c] sm:$0xf]
      %v1209 = vld [vmem:[%s2 + $0x110] sm:$0xf]
      %v1210 = vld [vmem:[%s2 + $0x114] sm:$0xf]
      %v1211 = vld [vmem:[%s2 + $0x118] sm:$0xf]
      %v1212 = vld [vmem:[%s2 + $0x11c] sm:$0xf]
      %v1213 = vld [vmem:[%s2 + $0x120] sm:$0xf]
      %v1214 = vld [vmem:[%s2 + $0x124] sm:$0xf]
      %v1215 = vld [vmem:[%s2 + $0x128] sm:$0xf]
      %v1216 = vld [vmem:[%s2 + $0x12c] sm:$0xf]
      %v1217 = vld [vmem:[%s2 + $0x130] sm:$0xf]
      %v1218 = vld [vmem:[%s2 + $0x134] sm:$0xf]
      %v1219 = vld [vmem:[%s2 + $0x138] sm:$0xf]
      %v1220 = vld [vmem:[%s2 + $0x13c] sm:$0xf]
      %v1221 = vld [vmem:[%s2 + $0x140] sm:$0xf]
      %v1222 = vld [vmem:[%s2 + $0x144] sm:$0xf]
      %v1223 = vld [vmem:[%s2 + $0x148] sm:$0xf]
      %v1224 = vld [vmem:[%s2 + $0x14c] sm:$0xf]
      %v1225 = vld [vmem:[%s2 + $0x150] sm:$0xf]
      %v1226 = vld [vmem:[%s2 + $0x154] sm:$0xf]
      %v1227 = vld [vmem:[%s2 + $0x158] sm:$0xf]
      %v1228 = vld [vmem:[%s2 + $0x15c] sm:$0xf]
      %v1229 = vld [vmem:[%s2 + $0x160] sm:$0xf]
      %v1230 = vld [vmem:[%s2 + $0x164] sm:$0xf]
      %v1231 = vld [vmem:[%s2 + $0x168] sm:$0xf]
      %v1232 = vld [vmem:[%s2 + $0x16c] sm:$0xf]
      %v1233 = vld [vmem:[%s2 + $0x170] sm:$0xf]
      %v1234 = vld [vmem:[%s2 + $0x174] sm:$0xf]
      %v1235 = vld [vmem:[%s2 + $0x178] sm:$0xf]
      %v1236 = vld [vmem:[%s2 + $0x17c] sm:$0xf]
      %v1237 = vld [vmem:[%s2 + $0x180] sm:$0xf]
      %v1238 = vld [vmem:[%s2 + $0x184] sm:$0xf]
      %v1239 = vld [vmem:[%s2 + $0x188] sm:$0xf]
      %v1240 = vld [vmem:[%s2 + $0x18c] sm:$0xf]
      %v1241 = vld [vmem:[%s2 + $0x190] sm:$0xf]
      %v1242 = vld [vmem:[%s2 + $0x194] sm:$0xf]
      %v1243 = vld [vmem:[%s2 + $0x198] sm:$0xf]
      %v1244 = vld [vmem:[%s2 + $0x19c] sm:$0xf]
      %v1245 = vld [vmem:[%s2 + $0x1a0] sm:$0xf]
      %v1246 = vld [vmem:[%s2 + $0x1a4] sm:$0xf]
      %v1247 = vld [vmem:[%s2 + $0x1a8] sm:$0xf]
      %v1248 = vld [vmem:[%s2 + $0x1ac] sm:$0xf]
      %v1249 = vld [vmem:[%s2 + $0x1b0] sm:$0xf]
      %v1250 = vld [vmem:[%s2 + $0x1b4] sm:$0xf]
      %v1251 = vld [vmem:[%s2 + $0x1b8] sm:$0xf]
      %v1252 = vld [vmem:[%s2 + $0x1bc] sm:$0xf]
      %v1253 = vld [vmem:[%s2 + $0x1c0] sm:$0xf]
      %v1254 = vld [vmem:[%s2 + $0x1c4] sm:$0xf]
      %v1255 = vld [vmem:[%s2 + $0x1c8] sm:$0xf]
      %v1256 = vld [vmem:[%s2 + $0x1cc] sm:$0xf]
      %v1257 = vld [vmem:[%s2 + $0x1d0] sm:$0xf]
      %v1258 = vld [vmem:[%s2 + $0x1d4] sm:$0xf]
      %v1259 = vld [vmem:[%s2 + $0x1d8] sm:$0xf]
      %v1260 = vld [vmem:[%s2 + $0x1dc] sm:$0xf]
      %v1261 = vld [vmem:[%s2 + $0x1e0] sm:$0xf]
      %v1262 = vld [vmem:[%s2 + $0x1e4] sm:$0xf]
      %v1263 = vld [vmem:[%s2 + $0x1e8] sm:$0xf]
      %v1264 = vld [vmem:[%s2 + $0x1ec] sm:$0xf]
      %v1265 = vld [vmem:[%s2 + $0x1f0] sm:$0xf]
      %v1266 = vld [vmem:[%s2 + $0x1f4] sm:$0xf]
      %v1267 = vld [vmem:[%s2 + $0x1f8] sm:$0xf]
      %v1268 = vld [vmem:[%s2 + $0x1fc] sm:$0xf]
      %v1269 = vld [vmem:[%s2 + $0x200] sm:$0xf]
      %v1270 = vld [vmem:[%s2 + $0x204] sm:$0xf]
      %v1271 = vld [vmem:[%s2 + $0x208] sm:$0xf]
      %v1272 = vld [vmem:[%s2 + $0x20c] sm:$0xf]
      %v1273 = vld [vmem:[%s2 + $0x210] sm:$0xf]
      %v1274 = vld [vmem:[%s2 + $0x214] sm:$0xf]
      %v1275 = vld [vmem:[%s2 + $0x218] sm:$0xf]
      %v1276 = vld [vmem:[%s2 + $0x21c] sm:$0xf]
      %v1277 = vld [vmem:[%s2 + $0x220] sm:$0xf]
      %v1278 = vld [vmem:[%s2 + $0x224] sm:$0xf]
      %v1279 = vld [vmem:[%s2 + $0x228] sm:$0xf]
      %v1280 = vld [vmem:[%s2 + $0x22c] sm:$0xf]
      %v1281 = vld [vmem:[%s2 + $0x230] sm:$0xf]
      %v1282 = vld [vmem:[%s2 + $0x234] sm:$0xf]
      %v1283 = vld [vmem:[%s2 + $0x238] sm:$0xf]
      %v1284 = vld [vmem:[%s2 + $0x23c] sm:$0xf]
      %v1285 = vld [vmem:[%s2 + $0x240] sm:$0xf]
      %v1286 = vld [vmem:[%s2 + $0x244] sm:$0xf]
      %v1287 = vld [vmem:[%s2 + $0x248] sm:$0xf]
      %v1288 = vld [vmem:[%s2 + $0x24c] sm:$0xf]
      %v1289 = vld [vmem:[%s2 + $0x250] sm:$0xf]
      %v1290 = vld [vmem:[%s2 + $0x254] sm:$0xf]
      %v1291 = vld [vmem:[%s2 + $0x258] sm:$0xf]
      %v1292 = vld [vmem:[%s2 + $0x25c] sm:$0xf]
      %v1293 = vld [vmem:[%s2 + $0x260] sm:$0xf]
      %v1294 = vld [vmem:[%s2 + $0x264] sm:$0xf]
      %v1295 = vld [vmem:[%s2 + $0x268] sm:$0xf]
      %v1296 = vld [vmem:[%s2 + $0x26c] sm:$0xf]
      %v1297 = vld [vmem:[%s2 + $0x270] sm:$0xf]
      %v1298 = vld [vmem:[%s2 + $0x274] sm:$0xf]
      %v1299 = vld [vmem:[%s2 + $0x278] sm:$0xf]
      %v1300 = vld [vmem:[%s2 + $0x27c] sm:$0xf]
      %v1461 = vunpack.c.l.b16 %v1141
      %v1462 = vunpack.c.l.b16 %v1142
      %v1463 = vunpack.c.l.b16 %v1143
      %v1464 = vunpack.c.l.b16 %v1144
      %v1465 = vunpack.c.l.b16 %v1145
      %v1466 = vunpack.c.l.b16 %v1146
      %v1467 = vunpack.c.l.b16 %v1147
      %v1468 = vunpack.c.l.b16 %v1148
      %v1469 = vunpack.c.l.b16 %v1149
      %v1470 = vunpack.c.l.b16 %v1150
      %v1471 = vunpack.c.l.b16 %v1151
      %v1472 = vunpack.c.l.b16 %v1152
      %v1473 = vunpack.c.l.b16 %v1153
      %v1474 = vunpack.c.l.b16 %v1154
      %v1475 = vunpack.c.l.b16 %v1155
      %v1476 = vunpack.c.l.b16 %v1156
      %v1477 = vunpack.c.l.b16 %v1157
      %v1478 = vunpack.c.l.b16 %v1158
      %v1479 = vunpack.c.l.b16 %v1159
      %v1480 = vunpack.c.l.b16 %v1160
      %v1481 = vunpack.c.l.b16 %v1161
      %v1482 = vunpack.c.l.b16 %v1162
      %v1483 = vunpack.c.l.b16 %v1163
      %v1484 = vunpack.c.l.b16 %v1164
      %v1485 = vunpack.c.l.b16 %v1165
      %v1486 = vunpack.c.l.b16 %v1166
      %v1487 = vunpack.c.l.b16 %v1167
      %v1488 = vunpack.c.l.b16 %v1168
      %v1489 = vunpack.c.l.b16 %v1169
      %v1490 = vunpack.c.l.b16 %v1170
      %v1491 = vunpack.c.l.b16 %v1171
      %v1492 = vunpack.c.l.b16 %v1172
      %v1493 = vunpack.c.l.b16 %v1173
      %v1494 = vunpack.c.l.b16 %v1174
      %v1495 = vunpack.c.l.b16 %v1175
      %v1496 = vunpack.c.l.b16 %v1176
      %v1497 = vunpack.c.l.b16 %v1177
      %v1498 = vunpack.c.l.b16 %v1178
      %v1499 = vunpack.c.l.b16 %v1179
      %v1500 = vunpack.c.l.b16 %v1180
      %v1501 = vunpack.c.l.b16 %v1181
      %v1502 = vunpack.c.l.b16 %v1182
      %v1503 = vunpack.c.l.b16 %v1183
      %v1504 = vunpack.c.l.b16 %v1184
      %v1505 = vunpack.c.l.b16 %v1185
      %v1506 = vunpack.c.l.b16 %v1186
      %v1507 = vunpack.c.l.b16 %v1187
      %v1508 = vunpack.c.l.b16 %v1188
      %v1509 = vunpack.c.l.b16 %v1189
      %v1510 = vunpack.c.l.b16 %v1190
      %v1511 = vunpack.c.l.b16 %v1191
      %v1512 = vunpack.c.l.b16 %v1192
      %v1513 = vunpack.c.l.b16 %v1193
      %v1514 = vunpack.c.l.b16 %v1194
      %v1515 = vunpack.c.l.b16 %v1195
      %v1516 = vunpack.c.l.b16 %v1196
      %v1517 = vunpack.c.l.b16 %v1197
      %v1518 = vunpack.c.l.b16 %v1198
      %v1519 = vunpack.c.l.b16 %v1199
      %v1520 = vunpack.c.l.b16 %v1200
      %v1521 = vunpack.c.l.b16 %v1201
      %v1522 = vunpack.c.l.b16 %v1202
      %v1523 = vunpack.c.l.b16 %v1203
      %v1524 = vunpack.c.l.b16 %v1204
      %v1525 = vunpack.c.l.b16 %v1205
      %v1526 = vunpack.c.l.b16 %v1206
      %v1527 = vunpack.c.l.b16 %v1207
      %v1528 = vunpack.c.l.b16 %v1208
      %v1529 = vunpack.c.l.b16 %v1209
      %v1530 = vunpack.c.l.b16 %v1210
      %v1531 = vunpack.c.l.b16 %v1211
      %v1532 = vunpack.c.l.b16 %v1212
      %v1533 = vunpack.c.l.b16 %v1213
      %v1534 = vunpack.c.l.b16 %v1214
      %v1535 = vunpack.c.l.b16 %v1215
      %v1536 = vunpack.c.l.b16 %v1216
      %v1537 = vunpack.c.l.b16 %v1217
      %v1538 = vunpack.c.l.b16 %v1218
      %v1539 = vunpack.c.l.b16 %v1219
      %v1540 = vunpack.c.l.b16 %v1220
      %v1541 = vunpack.c.l.b16 %v1221
      %v1542 = vunpack.c.l.b16 %v1222
      %v1543 = vunpack.c.l.b16 %v1223
      %v1544 = vunpack.c.l.b16 %v1224
      %v1545 = vunpack.c.l.b16 %v1225
      %v1546 = vunpack.c.l.b16 %v1226
      %v1547 = vunpack.c.l.b16 %v1227
      %v1548 = vunpack.c.l.b16 %v1228
      %v1549 = vunpack.c.l.b16 %v1229
      %v1550 = vunpack.c.l.b16 %v1230
      %v1551 = vunpack.c.l.b16 %v1231
      %v1552 = vunpack.c.l.b16 %v1232
      %v1553 = vunpack.c.l.b16 %v1233
      %v1554 = vunpack.c.l.b16 %v1234
      %v1555 = vunpack.c.l.b16 %v1235
      %v1556 = vunpack.c.l.b16 %v1236
      %v1557 = vunpack.c.l.b16 %v1237
      %v1558 = vunpack.c.l.b16 %v1238
      %v1559 = vunpack.c.l.b16 %v1239
      %v1560 = vunpack.c.l.b16 %v1240
      %v1561 = vunpack.c.l.b16 %v1241
      %v1562 = vunpack.c.l.b16 %v1242
      %v1563 = vunpack.c.l.b16 %v1243
      %v1564 = vunpack.c.l.b16 %v1244
      %v1565 = vunpack.c.l.b16 %v1245
      %v1566 = vunpack.c.l.b16 %v1246
      %v1567 = vunpack.c.l.b16 %v1247
      %v1568 = vunpack.c.l.b16 %v1248
      %v1569 = vunpack.c.l.b16 %v1249
      %v1570 = vunpack.c.l.b16 %v1250
      %v1571 = vunpack.c.l.b16 %v1251
      %v1572 = vunpack.c.l.b16 %v1252
      %v1573 = vunpack.c.l.b16 %v1253
      %v1574 = vunpack.c.l.b16 %v1254
      %v1575 = vunpack.c.l.b16 %v1255
      %v1576 = vunpack.c.l.b16 %v1256
      %v1577 = vunpack.c.l.b16 %v1257
      %v1578 = vunpack.c.l.b16 %v1258
      %v1579 = vunpack.c.l.b16 %v1259
      %v1580 = vunpack.c.l.b16 %v1260
      %v1581 = vunpack.c.l.b16 %v1261
      %v1582 = vunpack.c.l.b16 %v1262
      %v1583 = vunpack.c.l.b16 %v1263
      %v1584 = vunpack.c.l.b16 %v1264
      %v1585 = vunpack.c.l.b16 %v1265
      %v1586 = vunpack.c.l.b16 %v1266
      %v1587 = vunpack.c.l.b16 %v1267
      %v1588 = vunpack.c.l.b16 %v1268
      %v1589 = vunpack.c.l.b16 %v1269
      %v1590 = vunpack.c.l.b16 %v1270
      %v1591 = vunpack.c.l.b16 %v1271
      %v1592 = vunpack.c.l.b16 %v1272
      %v1593 = vunpack.c.l.b16 %v1273
      %v1594 = vunpack.c.l.b16 %v1274
      %v1595 = vunpack.c.l.b16 %v1275
      %v1596 = vunpack.c.l.b16 %v1276
      %v1597 = vunpack.c.l.b16 %v1277
      %v1598 = vunpack.c.l.b16 %v1278
      %v1599 = vunpack.c.l.b16 %v1279
      %v1600 = vunpack.c.l.b16 %v1280
      %v1601 = vunpack.c.l.b16 %v1281
      %v1602 = vunpack.c.l.b16 %v1282
      %v1603 = vunpack.c.l.b16 %v1283
      %v1604 = vunpack.c.l.b16 %v1284
      %v1605 = vunpack.c.l.b16 %v1285
      %v1606 = vunpack.c.l.b16 %v1286
      %v1607 = vunpack.c.l.b16 %v1287
      %v1608 = vunpack.c.l.b16 %v1288
      %v1609 = vunpack.c.l.b16 %v1289
      %v1610 = vunpack.c.l.b16 %v1290
      %v1611 = vunpack.c.l.b16 %v1291
      %v1612 = vunpack.c.l.b16 %v1292
      %v1613 = vunpack.c.l.b16 %v1293
      %v1614 = vunpack.c.l.b16 %v1294
      %v1615 = vunpack.c.l.b16 %v1295
      %v1616 = vunpack.c.l.b16 %v1296
      %v1617 = vunpack.c.l.b16 %v1297
      %v1618 = vunpack.c.l.b16 %v1298
      %v1619 = vunpack.c.l.b16 %v1299
      %v1620 = vunpack.c.l.b16 %v1300
      %v1621 = vpack.c.b16 %v1462, %v1461
      %v1622 = vpack.c.b16 %v1464, %v1463
      %v1623 = vpack.c.b16 %v1466, %v1465
      %v1624 = vpack.c.b16 %v1468, %v1467
      %v1625 = vpack.c.b16 %v1470, %v1469
      %v1626 = vpack.c.b16 %v1472, %v1471
      %v1627 = vpack.c.b16 %v1474, %v1473
      %v1628 = vpack.c.b16 %v1476, %v1475
      %v1629 = vpack.c.b16 %v1478, %v1477
      %v1630 = vpack.c.b16 %v1480, %v1479
      %v1631 = vpack.c.b16 %v1482, %v1481
      %v1632 = vpack.c.b16 %v1484, %v1483
      %v1633 = vpack.c.b16 %v1486, %v1485
      %v1634 = vpack.c.b16 %v1488, %v1487
      %v1635 = vpack.c.b16 %v1490, %v1489
      %v1636 = vpack.c.b16 %v1492, %v1491
      %v1637 = vpack.c.b16 %v1494, %v1493
      %v1638 = vpack.c.b16 %v1496, %v1495
      %v1639 = vpack.c.b16 %v1498, %v1497
      %v1640 = vpack.c.b16 %v1500, %v1499
      %v1641 = vpack.c.b16 %v1502, %v1501
      %v1642 = vpack.c.b16 %v1504, %v1503
      %v1643 = vpack.c.b16 %v1506, %v1505
      %v1644 = vpack.c.b16 %v1508, %v1507
      %v1645 = vpack.c.b16 %v1510, %v1509
      %v1646 = vpack.c.b16 %v1512, %v1511
      %v1647 = vpack.c.b16 %v1514, %v1513
      %v1648 = vpack.c.b16 %v1516, %v1515
      %v1649 = vpack.c.b16 %v1518, %v1517
      %v1650 = vpack.c.b16 %v1520, %v1519
      %v1651 = vpack.c.b16 %v1522, %v1521
      %v1652 = vpack.c.b16 %v1524, %v1523
      %v1653 = vpack.c.b16 %v1526, %v1525
      %v1654 = vpack.c.b16 %v1528, %v1527
      %v1655 = vpack.c.b16 %v1530, %v1529
      %v1656 = vpack.c.b16 %v1532, %v1531
      %v1657 = vpack.c.b16 %v1534, %v1533
      %v1658 = vpack.c.b16 %v1536, %v1535
      %v1659 = vpack.c.b16 %v1538, %v1537
      %v1660 = vpack.c.b16 %v1540, %v1539
      %v1661 = vpack.c.b16 %v1542, %v1541
      %v1662 = vpack.c.b16 %v1544, %v1543
      %v1663 = vpack.c.b16 %v1546, %v1545
      %v1664 = vpack.c.b16 %v1548, %v1547
      %v1665 = vpack.c.b16 %v1550, %v1549
      %v1666 = vpack.c.b16 %v1552, %v1551
      %v1667 = vpack.c.b16 %v1554, %v1553
      %v1668 = vpack.c.b16 %v1556, %v1555
      %v1669 = vpack.c.b16 %v1558, %v1557
      %v1670 = vpack.c.b16 %v1560, %v1559
      %v1671 = vpack.c.b16 %v1562, %v1561
      %v1672 = vpack.c.b16 %v1564, %v1563
      %v1673 = vpack.c.b16 %v1566, %v1565
      %v1674 = vpack.c.b16 %v1568, %v1567
      %v1675 = vpack.c.b16 %v1570, %v1569
      %v1676 = vpack.c.b16 %v1572, %v1571
      %v1677 = vpack.c.b16 %v1574, %v1573
      %v1678 = vpack.c.b16 %v1576, %v1575
      %v1679 = vpack.c.b16 %v1578, %v1577
      %v1680 = vpack.c.b16 %v1580, %v1579
      %v1681 = vpack.c.b16 %v1582, %v1581
      %v1682 = vpack.c.b16 %v1584, %v1583
      %v1683 = vpack.c.b16 %v1586, %v1585
      %v1684 = vpack.c.b16 %v1588, %v1587
      %v1685 = vpack.c.b16 %v1590, %v1589
      %v1686 = vpack.c.b16 %v1592, %v1591
      %v1687 = vpack.c.b16 %v1594, %v1593
      %v1688 = vpack.c.b16 %v1596, %v1595
      %v1689 = vpack.c.b16 %v1598, %v1597
      %v1690 = vpack.c.b16 %v1600, %v1599
      %v1691 = vpack.c.b16 %v1602, %v1601
      %v1692 = vpack.c.b16 %v1604, %v1603
      %v1693 = vpack.c.b16 %v1606, %v1605
      %v1694 = vpack.c.b16 %v1608, %v1607
      %v1695 = vpack.c.b16 %v1610, %v1609
      %v1696 = vpack.c.b16 %v1612, %v1611
      %v1697 = vpack.c.b16 %v1614, %v1613
      %v1698 = vpack.c.b16 %v1616, %v1615
      %v1699 = vpack.c.b16 %v1618, %v1617
      %v1700 = vpack.c.b16 %v1620, %v1619
      %1781 = vmatpush.bf16.msra.mxu0 %v1628
      %1782 = vmatpush.bf16.msra.mxu0 %v1627
      %1783 = vmatpush.bf16.msra.mxu0 %v1626
      %1784 = vmatpush.bf16.msra.mxu0 %v1625
      %1785 = vmatpush.bf16.msra.mxu0 %v1624
      %1786 = vmatpush.bf16.msra.mxu0 %v1623
      %1787 = vmatpush.bf16.msra.mxu0 %v1622
      %1788 = vmatpush.bf16.msra.mxu0 %v1621
      %1789 = vmatmul.bf16.gmra.mxu0 %v1100
      %v1790 = vpop.f32.mrf.mxu0
      %v1791 = vadd.f32 %v300, %v1790
      %v1792 = vpop.f32.mrf.mxu0
      %1793 = vdwg.mxu0
      %1794 = vmatpush.bf16.msra.mxu0 %v1636
      %1795 = vmatpush.bf16.msra.mxu0 %v1635
      %1796 = vmatpush.bf16.msra.mxu0 %v1634
      %1797 = vmatpush.bf16.msra.mxu0 %v1633
      %1798 = vmatpush.bf16.msra.mxu0 %v1632
      %1799 = vmatpush.bf16.msra.mxu0 %v1631
      %1800 = vmatpush.bf16.msra.mxu0 %v1630
      %1801 = vmatpush.bf16.msra.mxu0 %v1629
      %1802 = vmatmul.bf16.gmra.mxu0 %v1101
      %v1803 = vpop.f32.mrf.mxu0
      %v1804 = vadd.f32 %v1791, %v1803
      %v1805 = vpop.f32.mrf.mxu0
      %1806 = vdwg.mxu0
      %1807 = vmatpush.bf16.msra.mxu0 %v1644
      %1808 = vmatpush.bf16.msra.mxu0 %v1643
      %1809 = vmatpush.bf16.msra.mxu0 %v1642
      %1810 = vmatpush.bf16.msra.mxu0 %v1641
      %1811 = vmatpush.bf16.msra.mxu0 %v1640
      %1812 = vmatpush.bf16.msra.mxu0 %v1639
      %1813 = vmatpush.bf16.msra.mxu0 %v1638
      %1814 = vmatpush.bf16.msra.mxu0 %v1637
      %1815 = vmatmul.bf16.gmra.mxu0 %v1115
      %v1816 = vpop.f32.mrf.mxu0
      %v1817 = vadd.f32 %v1804, %v1816
      %v1818 = vpop.f32.mrf.mxu0
      %1819 = vdwg.mxu0
      %1820 = vmatpush.bf16.msra.mxu0 %v1652
      %1821 = vmatpush.bf16.msra.mxu0 %v1651
      %1822 = vmatpush.bf16.msra.mxu0 %v1650
      %1823 = vmatpush.bf16.msra.mxu0 %v1649
      %1824 = vmatpush.bf16.msra.mxu0 %v1648
      %1825 = vmatpush.bf16.msra.mxu0 %v1647
      %1826 = vmatpush.bf16.msra.mxu0 %v1646
      %1827 = vmatpush.bf16.msra.mxu0 %v1645
      %1828 = vmatmul.bf16.gmra.mxu0 %v1122
      %v1829 = vpop.f32.mrf.mxu0
      %v1830 = vadd.f32 %v1817, %v1829
      %v1831 = vpop.f32.mrf.mxu0
      %1832 = vdwg.mxu0
      %1833 = vmatpush.bf16.msra.mxu0 %v1660
      %1834 = vmatpush.bf16.msra.mxu0 %v1659
      %1835 = vmatpush.bf16.msra.mxu0 %v1658
      %1836 = vmatpush.bf16.msra.mxu0 %v1657
      %1837 = vmatpush.bf16.msra.mxu0 %v1656
      %1838 = vmatpush.bf16.msra.mxu0 %v1655
      %1839 = vmatpush.bf16.msra.mxu0 %v1654
      %1840 = vmatpush.bf16.msra.mxu0 %v1653
      %1841 = vmatmul.bf16.gmra.mxu0 %v1125
      %v1842 = vpop.f32.mrf.mxu0
      %v1843 = vadd.f32 %v1830, %v1842
      %v1844 = vpop.f32.mrf.mxu0
      %1845 = vdwg.mxu0
      %1846 = vmatpush.bf16.msra.mxu0 %v1668
      %1847 = vmatpush.bf16.msra.mxu0 %v1667
      %1848 = vmatpush.bf16.msra.mxu0 %v1666
      %1849 = vmatpush.bf16.msra.mxu0 %v1665
      %1850 = vmatpush.bf16.msra.mxu0 %v1664
      %1851 = vmatpush.bf16.msra.mxu0 %v1663
      %1852 = vmatpush.bf16.msra.mxu0 %v1662
      %1853 = vmatpush.bf16.msra.mxu0 %v1661
      %1854 = vmatmul.bf16.gmra.mxu0 %v1126
      %v1855 = vpop.f32.mrf.mxu0
      %v1856 = vadd.f32 %v1843, %v1855
      %v1857 = vpop.f32.mrf.mxu0
      %1858 = vdwg.mxu0
      %1859 = vmatpush.bf16.msra.mxu0 %v1676
      %1860 = vmatpush.bf16.msra.mxu0 %v1675
      %1861 = vmatpush.bf16.msra.mxu0 %v1674
      %1862 = vmatpush.bf16.msra.mxu0 %v1673
      %1863 = vmatpush.bf16.msra.mxu0 %v1672
      %1864 = vmatpush.bf16.msra.mxu0 %v1671
      %1865 = vmatpush.bf16.msra.mxu0 %v1670
      %1866 = vmatpush.bf16.msra.mxu0 %v1669
      %1867 = vmatmul.bf16.gmra.mxu0 %v1131
      %v1868 = vpop.f32.mrf.mxu0
      %v1869 = vadd.f32 %v1856, %v1868
      %v1870 = vpop.f32.mrf.mxu0
      %1871 = vdwg.mxu0
      %1872 = vmatpush.bf16.msra.mxu0 %v1684
      %1873 = vmatpush.bf16.msra.mxu0 %v1683
      %1874 = vmatpush.bf16.msra.mxu0 %v1682
      %1875 = vmatpush.bf16.msra.mxu0 %v1681
      %1876 = vmatpush.bf16.msra.mxu0 %v1680
      %1877 = vmatpush.bf16.msra.mxu0 %v1679
      %1878 = vmatpush.bf16.msra.mxu0 %v1678
      %1879 = vmatpush.bf16.msra.mxu0 %v1677
      %1880 = vmatmul.bf16.gmra.mxu0 %v1134
      %v1881 = vpop.f32.mrf.mxu0
      %v1882 = vadd.f32 %v1869, %v1881
      %v1883 = vpop.f32.mrf.mxu0
      %1884 = vdwg.mxu0
      %1885 = vmatpush.bf16.msra.mxu0 %v1692
      %1886 = vmatpush.bf16.msra.mxu0 %v1691
      %1887 = vmatpush.bf16.msra.mxu0 %v1690
      %1888 = vmatpush.bf16.msra.mxu0 %v1689
      %1889 = vmatpush.bf16.msra.mxu0 %v1688
      %1890 = vmatpush.bf16.msra.mxu0 %v1687
      %1891 = vmatpush.bf16.msra.mxu0 %v1686
      %1892 = vmatpush.bf16.msra.mxu0 %v1685
      %1893 = vmatmul.bf16.gmra.mxu0 %v1137
      %v1894 = vpop.f32.mrf.mxu0
      %v1895 = vadd.f32 %v1882, %v1894
      %v1896 = vpop.f32.mrf.mxu0
      %1897 = vdwg.mxu0
      %1898 = vmatpush.bf16.msra.mxu0 %v1700
      %1899 = vmatpush.bf16.msra.mxu0 %v1699
      %1900 = vmatpush.bf16.msra.mxu0 %v1698
      %1901 = vmatpush.bf16.msra.mxu0 %v1697
      %1902 = vmatpush.bf16.msra.mxu0 %v1696
      %1903 = vmatpush.bf16.msra.mxu0 %v1695
      %1904 = vmatpush.bf16.msra.mxu0 %v1694
      %1905 = vmatpush.bf16.msra.mxu0 %v1693
      %1906 = vmatmul.bf16.gmra.mxu0 %v1138
      %v1907 = vpop.f32.mrf.mxu0
      %v1908 = vadd.f32 %v1895, %v1907
      %v1909 = vpop.f32.mrf.mxu0
      %1910 = vdwg.mxu0
      %v1912 = vrot.slane %v1908, 1
      %v1914 = vmax.f32 %v1908, %v1912
      %v1916 = vrot.slane %v1914, 1
      %v1918 = vrot.slane %v1914, 2
      %v1920 = vrot.slane %v1914, 3
      %vm1922 = vcmask 1040384
      %v1923 = vsel %vm1922, %v1914, %v1916
      %v1924 = vsel %vm1090, %v1923, %v1918
      %vm1925 = vcmask 1042432
      %v1926 = vsel %vm1925, %v1924, %v1920
      %v1927 = vxor.u32 %v1926, 2147483648
      %v1928 = vmul.f32 %v1927, 1.442695
      %v1929 = vpow.pop %v1928
      %v1930 = vadd.f32 %v1929, 1.0
      %v1931 = vrcp.pop %v1930
      %v1932 = vmul.f32 %v1930, %v1931
      %v1933 = vsub.f32 1.0, %v1932
      %v1934 = vmul.f32 %v1931, %v1933
      %v1935 = vadd.f32 %v1931, %v1934
      %vm1936 = vweird.f32 %v1930
      %vm1937 = vweird.f32 %v1931
      %vm1938 = vmor %vm1936, %vm1937
      %v1939 = vsel %vm1938, %v1931, %v1935
      %v1940 = vand.u32 2147483647, %v1930
      %vm1941 = vcmp.eq.f32.partialorder %v1940, 8.507059e+37
      %v1942 = vand.u32 %v1930, 2147483648
      %v1943 = vor.u32 1.1754944e-38, %v1942
      %v1944 = vsel %vm1941, %v1943, %v1939
      %v1945 = vmul.f32 1.0, %v1944
      %v1947 = vrot.slane %v1945, 7
      %v1949 = vsel %vm1922, 0.0, %v1947
      %vm1950 = vcmask 1044480
      %v1951 = vsel %vm1950, %v1949, 0.0
      %v1952 = vpack.c.bf16 %v1951, %v1951
      %v1954 = vunpack.c.l.b16 %v1952
      %v1955 = vpack.c.b16 %v1954, %v1954
      %v1957 = vshrl.u32 %v1955, 16
      %v1959 = vshll.u32 %v1955, 16
      %v1961 = vrot.slane %v1959, 1
      %v1962 = vor.u32 %v1957, %v1961
      %1963 = vrot.lane.b32.xlu0 %v1962, 64
      %v1964 = vpop.permute.xlu0 %1963
      %v1965 = vrot.slane %v1955, 1
      %vm1966 = vcmask 523264
      %v1969 = vsel %vm1966, %v1952, %v1964
      %v1972 = vperm.slane %v302, 0
      %v1973 = vperm.slane %v302, 1
      %v2000 = vunpack.c.l.b16 %v241
      %v2001 = vunpack.c.h.b16 %v241
      %v2002 = vunpack.c.l.b16 %v242
      %v2003 = vunpack.c.h.b16 %v242
      %v2004 = vunpack.c.l.b16 %v243
      %v2005 = vunpack.c.h.b16 %v243
      %v2006 = vunpack.c.l.b16 %v244
      %v2007 = vunpack.c.h.b16 %v244
      %v2008 = vunpack.c.l.b16 %v245
      %v2009 = vunpack.c.h.b16 %v245
      %v2010 = vunpack.c.l.b16 %v246
      %v2011 = vunpack.c.h.b16 %v246
      %v2012 = vunpack.c.l.b16 %v247
      %v2013 = vunpack.c.h.b16 %v247
      %v2014 = vunpack.c.l.b16 %v248
      %v2015 = vunpack.c.h.b16 %v248
      %v2016 = vunpack.c.l.b16 %v249
      %v2017 = vunpack.c.h.b16 %v249
      %v2018 = vunpack.c.l.b16 %v250
      %v2019 = vunpack.c.h.b16 %v250
      %v2020 = vunpack.c.l.b16 %v251
      %v2021 = vunpack.c.h.b16 %v251
      %v2022 = vunpack.c.l.b16 %v252
      %v2023 = vunpack.c.h.b16 %v252
      %v2024 = vunpack.c.l.b16 %v253
      %v2025 = vunpack.c.h.b16 %v253
      %v2026 = vunpack.c.l.b16 %v254
      %v2027 = vunpack.c.h.b16 %v254
      %v2028 = vunpack.c.l.b16 %v255
      %v2029 = vunpack.c.h.b16 %v255
      %v2030 = vunpack.c.l.b16 %v256
      %v2031 = vunpack.c.h.b16 %v256
      %v2032 = vunpack.c.l.b16 %v257
      %v2033 = vunpack.c.h.b16 %v257
      %v2034 = vunpack.c.l.b16 %v258
      %v2035 = vunpack.c.h.b16 %v258
      %v2036 = vunpack.c.l.b16 %v259
      %v2037 = vunpack.c.h.b16 %v259
      %v2038 = vunpack.c.l.b16 %v260
      %v2039 = vunpack.c.h.b16 %v260
      %v2040 = vunpack.c.l.b16 %v261
      %v2041 = vunpack.c.h.b16 %v261
      %v2042 = vunpack.c.l.b16 %v262
      %v2043 = vunpack.c.h.b16 %v262
      %v2044 = vunpack.c.l.b16 %v263
      %v2045 = vunpack.c.h.b16 %v263
      %v2046 = vunpack.c.l.b16 %v264
      %v2047 = vunpack.c.h.b16 %v264
      %v2048 = vpack.c.b16 %v2002, %v2000
      %v2049 = vpack.c.b16 %v2003, %v2001
      %v2050 = vpack.c.b16 %v2006, %v2004
      %v2051 = vpack.c.b16 %v2007, %v2005
      %v2052 = vpack.c.b16 %v2010, %v2008
      %v2053 = vpack.c.b16 %v2011, %v2009
      %v2054 = vpack.c.b16 %v2014, %v2012
      %v2055 = vpack.c.b16 %v2015, %v2013
      %v2056 = vpack.c.b16 %v2018, %v2016
      %v2057 = vpack.c.b16 %v2019, %v2017
      %v2058 = vpack.c.b16 %v2022, %v2020
      %v2059 = vpack.c.b16 %v2023, %v2021
      %v2060 = vpack.c.b16 %v2026, %v2024
      %v2061 = vpack.c.b16 %v2027, %v2025
      %v2062 = vpack.c.b16 %v2030, %v2028
      %v2063 = vpack.c.b16 %v2031, %v2029
      %v2064 = vpack.c.b16 %v2034, %v2032
      %v2065 = vpack.c.b16 %v2035, %v2033
      %v2066 = vpack.c.b16 %v2038, %v2036
      %v2067 = vpack.c.b16 %v2039, %v2037
      %v2068 = vpack.c.b16 %v2042, %v2040
      %v2069 = vpack.c.b16 %v2043, %v2041
      %v2070 = vpack.c.b16 %v2046, %v2044
      %v2071 = vpack.c.b16 %v2047, %v2045
      %v2097 = vsel %vm1966, %v1965, 0
      %2099 = vmatpush.bf16.msra.mxu0 %v2062
      %2100 = vmatpush.bf16.msra.mxu0 %v2060
      %2101 = vmatpush.bf16.msra.mxu0 %v2058
      %2102 = vmatpush.bf16.msra.mxu0 %v2056
      %2103 = vmatpush.bf16.msra.mxu0 %v2054
      %2104 = vmatpush.bf16.msra.mxu0 %v2052
      %2105 = vmatpush.bf16.msra.mxu0 %v2050
      %2106 = vmatpush.bf16.msra.mxu0 %v2048
      %2107 = vmatmul.bf16.gmra.mxu0 %v1969
      %v2108 = vpop.f32.mrf.mxu0
      %v2109 = vadd.f32 %v1972, %v2108
      %v2110 = vpop.f32.mrf.mxu0
      %2111 = vdwg.mxu0
      %2112 = vmatpush.bf16.msra.mxu0 0
      %2113 = vmatpush.bf16.msra.mxu0 0
      %2114 = vmatpush.bf16.msra.mxu0 0
      %2115 = vmatpush.bf16.msra.mxu0 0
      %2116 = vmatpush.bf16.msra.mxu0 %v2070
      %2117 = vmatpush.bf16.msra.mxu0 %v2068
      %2118 = vmatpush.bf16.msra.mxu0 %v2066
      %2119 = vmatpush.bf16.msra.mxu0 %v2064
      %2120 = vmatmul.bf16.gmra.mxu0 %v2097
      %v2121 = vpop.f32.mrf.mxu0
      %v2122 = vadd.f32 %v2109, %v2121
      %v2123 = vpop.f32.mrf.mxu0
      %2124 = vdwg.mxu0
      %2125 = vmatpush.bf16.msra.mxu0 %v2063
      %2126 = vmatpush.bf16.msra.mxu0 %v2061
      %2127 = vmatpush.bf16.msra.mxu0 %v2059
      %2128 = vmatpush.bf16.msra.mxu0 %v2057
      %2129 = vmatpush.bf16.msra.mxu0 %v2055
      %2130 = vmatpush.bf16.msra.mxu0 %v2053
      %2131 = vmatpush.bf16.msra.mxu0 %v2051
      %2132 = vmatpush.bf16.msra.mxu0 %v2049
      %2133 = vmatmul.bf16.gmra.mxu0 %v1969
      %v2134 = vpop.f32.mrf.mxu0
      %v2135 = vadd.f32 %v1973, %v2134
      %v2136 = vpop.f32.mrf.mxu0
      %2137 = vdwg.mxu0
      %2138 = vmatpush.bf16.msra.mxu0 0
      %2139 = vmatpush.bf16.msra.mxu0 0
      %2140 = vmatpush.bf16.msra.mxu0 0
      %2141 = vmatpush.bf16.msra.mxu0 0
      %2142 = vmatpush.bf16.msra.mxu0 %v2071
      %2143 = vmatpush.bf16.msra.mxu0 %v2069
      %2144 = vmatpush.bf16.msra.mxu0 %v2067
      %2145 = vmatpush.bf16.msra.mxu0 %v2065
      %2146 = vmatmul.bf16.gmra.mxu0 %v2097
      %v2147 = vpop.f32.mrf.mxu0
      %v2148 = vadd.f32 %v2135, %v2147
      %v2149 = vpop.f32.mrf.mxu0
      %2150 = vdwg.mxu0
      %v2153 = vrot.slane %v2122, 1
      %v2154 = vrot.slane %v2148, 1
      %v2157 = vmax.f32 %v2122, %v2153
      %v2158 = vmax.f32 %v2148, %v2154
      %v2161 = vrot.slane %v2157, 1
      %v2162 = vrot.slane %v2158, 1
      %v2165 = vsel %vm1922, %v2157, %v2161
      %v2166 = vsel %vm1922, %v2158, %v2162
      %v2167 = vxor.u32 %v2165, 2147483648
      %v2168 = vxor.u32 %v2166, 2147483648
      %v2169 = vmul.f32 %v2167, 1.442695
      %v2170 = vpow.pop %v2169
      %v2171 = vmul.f32 %v2168, 1.442695
      %v2172 = vpow.pop %v2171
      %v2173 = vadd.f32 %v2170, 1.0
      %v2174 = vadd.f32 %v2172, 1.0
      %v2175 = vrcp.pop %v2173
      %v2176 = vmul.f32 %v2173, %v2175
      %v2177 = vsub.f32 1.0, %v2176
      %v2178 = vmul.f32 %v2175, %v2177
      %v2179 = vadd.f32 %v2175, %v2178
      %vm2180 = vweird.f32 %v2173
      %vm2181 = vweird.f32 %v2175
      %vm2182 = vmor %vm2180, %vm2181
      %v2183 = vsel %vm2182, %v2175, %v2179
      %v2184 = vand.u32 2147483647, %v2173
      %vm2185 = vcmp.eq.f32.partialorder %v2184, 8.507059e+37
      %v2186 = vand.u32 %v2173, 2147483648
      %v2187 = vor.u32 1.1754944e-38, %v2186
      %v2188 = vsel %vm2185, %v2187, %v2183
      %v2189 = vmul.f32 1.0, %v2188
      %v2190 = vrcp.pop %v2174
      %v2191 = vmul.f32 %v2174, %v2190
      %v2192 = vsub.f32 1.0, %v2191
      %v2193 = vmul.f32 %v2190, %v2192
      %v2194 = vadd.f32 %v2190, %v2193
      %vm2195 = vweird.f32 %v2174
      %vm2196 = vweird.f32 %v2190
      %vm2197 = vmor %vm2195, %vm2196
      %v2198 = vsel %vm2197, %v2190, %v2194
      %v2199 = vand.u32 2147483647, %v2174
      %vm2200 = vcmp.eq.f32.partialorder %v2199, 8.507059e+37
      %v2201 = vand.u32 %v2174, 2147483648
      %v2202 = vor.u32 1.1754944e-38, %v2201
      %v2203 = vsel %vm2200, %v2202, %v2198
      %v2204 = vmul.f32 1.0, %v2203
      %v2205 = vpack.c.bf16 %v2189, %v2189
      %v2206 = vpack.c.bf16 %v2204, %v2204
      %v2209 = vunpack.c.l.b16 %v265
      %v2210 = vunpack.c.h.b16 %v265
      %v2211 = vunpack.c.l.b16 %v266
      %v2212 = vunpack.c.h.b16 %v266
      %v2213 = vpack.c.b16 %v2211, %v2209
      %v2214 = vpack.c.b16 %v2212, %v2210
      %2217 = vmatpush.bf16.xpose.msra.mxu0 0
      %2218 = vmatpush.bf16.xpose.msra.mxu0 0
      %2219 = vmatpush.bf16.xpose.msra.mxu0 0
      %2220 = vmatpush.bf16.xpose.msra.mxu0 0
      %2221 = vmatpush.bf16.xpose.msra.mxu0 0
      %2222 = vmatpush.bf16.xpose.msra.mxu0 0
      %2223 = vmatpush.bf16.xpose.msra.mxu0 0
      %2224 = vmatpush.bf16.xpose.msra.mxu0 %v2213
      %2225 = vmatmul.bf16.gmra.mxu0 %v2205
      %v2226 = vpop.f32.mrf.mxu0
      %v2227 = vadd.f32 %v303, %v2226
      %v2228 = vpop.f32.mrf.mxu0
      %2229 = vdwg.mxu0
      %2230 = vmatpush.bf16.xpose.msra.mxu0 0
      %2231 = vmatpush.bf16.xpose.msra.mxu0 0
      %2232 = vmatpush.bf16.xpose.msra.mxu0 0
      %2233 = vmatpush.bf16.xpose.msra.mxu0 0
      %2234 = vmatpush.bf16.xpose.msra.mxu0 0
      %2235 = vmatpush.bf16.xpose.msra.mxu0 0
      %2236 = vmatpush.bf16.xpose.msra.mxu0 0
      %2237 = vmatpush.bf16.xpose.msra.mxu0 %v2214
      %2238 = vmatmul.bf16.gmra.mxu0 %v2206
      %v2239 = vpop.f32.mrf.mxu0
      %v2240 = vadd.f32 %v2227, %v2239
      %v2241 = vpop.f32.mrf.mxu0
      %2242 = vdwg.mxu0
      %v2243 = vxor.u32 %v2240, 2147483648
      %v2244 = vmul.f32 %v2243, 1.442695
      %v2245 = vpow.pop %v2244
      %v2246 = vadd.f32 %v2245, 1.0
      %v2247 = vrcp.pop %v2246
      %v2248 = vmul.f32 %v2246, %v2247
      %v2249 = vsub.f32 1.0, %v2248
      %v2250 = vmul.f32 %v2247, %v2249
      %v2251 = vadd.f32 %v2247, %v2250
      %vm2252 = vweird.f32 %v2246
      %vm2253 = vweird.f32 %v2247
      %vm2254 = vmor %vm2252, %vm2253
      %v2255 = vsel %vm2254, %v2247, %v2251
      %v2256 = vand.u32 2147483647, %v2246
      %vm2257 = vcmp.eq.f32.partialorder %v2256, 8.507059e+37
      %v2258 = vand.u32 %v2246, 2147483648
      %v2259 = vor.u32 1.1754944e-38, %v2258
      %v2260 = vsel %vm2257, %v2259, %v2255
      %v2261 = vmul.f32 1.0, %v2260
      %v2262 = vpack.c.bf16 %v924, %v924
      %2264 = vrot.lane.b32.xlu0 %v2262, 32
      %v2265 = vpop.permute.xlu0 %2264
      %v2270 = vunpack.c.l.b16 %v287
      %v2271 = vunpack.c.l.b16 %v288
      %v2272 = vunpack.c.l.b16 %v289
      %v2273 = vunpack.c.l.b16 %v290
      %v2274 = vpack.c.b16 %v2271, %v2270
      %v2275 = vpack.c.b16 %v2273, %v2272
      %v2279 = vsel %vm381, %v2265, 0
      %2281 = vmatpush.bf16.msra.mxu0 0
      %2282 = vmatpush.bf16.msra.mxu0 0
      %2283 = vmatpush.bf16.msra.mxu0 0
      %2284 = vmatpush.bf16.msra.mxu0 0
      %2285 = vmatpush.bf16.msra.mxu0 0
      %2286 = vmatpush.bf16.msra.mxu0 0
      %2287 = vmatpush.bf16.msra.mxu0 %v2275
      %2288 = vmatpush.bf16.msra.mxu0 %v2274
      %2289 = vmatmul.bf16.gmra.mxu0 %v2279
      %v2290 = vpop.f32.mrf.mxu0
      %v2291 = vadd.f32 %v305, %v2290
      %v2292 = vpop.f32.mrf.mxu0
      %2293 = vdwg.mxu0
      %v2294 = vpack.c.bf16 %v2261, %v2261
      %v2297 = vunpack.c.l.b16 %v291
      %v2298 = vunpack.c.l.b16 %v292
      %v2299 = vpack.c.b16 %v2298, %v2297
      %vm2301 = vcmask 130048
      %v2303 = vsel %vm2301, %v2294, 0
      %2305 = vmatpush.bf16.msra.mxu0 0
      %2306 = vmatpush.bf16.msra.mxu0 0
      %2307 = vmatpush.bf16.msra.mxu0 0
      %2308 = vmatpush.bf16.msra.mxu0 0
      %2309 = vmatpush.bf16.msra.mxu0 0
      %2310 = vmatpush.bf16.msra.mxu0 0
      %2311 = vmatpush.bf16.msra.mxu0 0
      %2312 = vmatpush.bf16.msra.mxu0 %v2299
      %2313 = vmatmul.bf16.gmra.mxu0 %v2303
      %v2314 = vpop.f32.mrf.mxu0
      %v2315 = vadd.f32 0.0, %v2314
      %v2316 = vpop.f32.mrf.mxu0
      %2317 = vdwg.mxu0
      %v2318 = vadd.f32 %v2291, %v2315
      %v2319 = vshrl.u32 %v2294, 16
      %v2323 = vunpack.c.l.b16 %v293
      %v2324 = vunpack.c.l.b16 %v294
      %v2325 = vpack.c.b16 %v2324, %v2323
      %v2328 = vsel %vm2301, %v2319, 0
      %2330 = vmatpush.bf16.msra.mxu0 0
      %2331 = vmatpush.bf16.msra.mxu0 0
      %2332 = vmatpush.bf16.msra.mxu0 0
      %2333 = vmatpush.bf16.msra.mxu0 0
      %2334 = vmatpush.bf16.msra.mxu0 0
      %2335 = vmatpush.bf16.msra.mxu0 0
      %2336 = vmatpush.bf16.msra.mxu0 0
      %2337 = vmatpush.bf16.msra.mxu0 %v2325
      %2338 = vmatmul.bf16.gmra.mxu0 %v2328
      %v2339 = vpop.f32.mrf.mxu0
      %v2340 = vadd.f32 0.0, %v2339
      %v2341 = vpop.f32.mrf.mxu0
      %2342 = vdwg.mxu0
      %v2343 = vadd.f32 %v2318, %v2340
      %v2344 = vxor.u32 %v2343, 2147483648
      %v2345 = vmul.f32 %v2344, 1.442695
      %v2346 = vpow.pop %v2345
      %v2347 = vadd.f32 %v2346, 1.0
      %v2348 = vrcp.pop %v2347
      %v2349 = vmul.f32 %v2347, %v2348
      %v2350 = vsub.f32 1.0, %v2349
      %v2351 = vmul.f32 %v2348, %v2350
      %v2352 = vadd.f32 %v2348, %v2351
      %vm2353 = vweird.f32 %v2347
      %vm2354 = vweird.f32 %v2348
      %vm2355 = vmor %vm2353, %vm2354
      %v2356 = vsel %vm2355, %v2348, %v2352
      %v2357 = vand.u32 2147483647, %v2347
      %vm2358 = vcmp.eq.f32.partialorder %v2357, 8.507059e+37
      %v2359 = vand.u32 %v2347, 2147483648
      %v2360 = vor.u32 1.1754944e-38, %v2359
      %v2361 = vsel %vm2358, %v2360, %v2356
      %v2362 = vmul.f32 1.0, %v2361
      %v2363 = vpack.c.bf16 %v2362, %v2362
      %v2368 = vunpack.c.l.b16 %v295
      %v2369 = vunpack.c.l.b16 %v296
      %v2370 = vunpack.c.l.b16 %v297
      %v2371 = vunpack.c.l.b16 %v298
      %v2372 = vpack.c.b16 %v2369, %v2368
      %v2373 = vpack.c.b16 %v2371, %v2370
      %2376 = vmatpush.bf16.xpose.msra.mxu0 0
      %2377 = vmatpush.bf16.xpose.msra.mxu0 0
      %2378 = vmatpush.bf16.xpose.msra.mxu0 0
      %2379 = vmatpush.bf16.xpose.msra.mxu0 0
      %2380 = vmatpush.bf16.xpose.msra.mxu0 0
      %2381 = vmatpush.bf16.xpose.msra.mxu0 0
      %2382 = vmatpush.bf16.xpose.msra.mxu0 %v2373
      %2383 = vmatpush.bf16.xpose.msra.mxu0 %v2372
      %2384 = vmatmul.bf16.gmra.mxu0 %v2363
      %v2385 = vpop.f32.mrf.mxu0
      %v2386 = vadd.f32 %v306, %v2385
      %v2387 = vpop.f32.mrf.mxu0
      %2388 = vdwg.mxu0
      %v2389 = vxor.u32 %v2386, 2147483648
      %v2390 = vmul.f32 %v2389, 1.442695
      %v2391 = vpow.pop %v2390
      %v2392 = vadd.f32 %v2391, 1.0
      %v2393 = vrcp.pop %v2392
      %v2394 = vmul.f32 %v2392, %v2393
      %v2395 = vsub.f32 1.0, %v2394
      %v2396 = vmul.f32 %v2393, %v2395
      %v2397 = vadd.f32 %v2393, %v2396
      %vm2398 = vweird.f32 %v2392
      %vm2399 = vweird.f32 %v2393
      %vm2400 = vmor %vm2398, %vm2399
      %v2401 = vsel %vm2400, %v2393, %v2397
      %v2402 = vand.u32 2147483647, %v2392
      %vm2403 = vcmp.eq.f32.partialorder %v2402, 8.507059e+37
      %v2404 = vand.u32 %v2392, 2147483648
      %v2405 = vor.u32 1.1754944e-38, %v2404
      %v2406 = vsel %vm2403, %v2405, %v2401
      %v2407 = vmul.f32 1.0, %v2406
      %v2408 = vmul.f32 %v2407, %v307
      %vm2409 = vcmask 253952
      %v2410 = vsel %vm2409, %v2408, 0.0
      %2411 = vadd.xlane.f32.xlu0 %v2410
      %v2412 = vpop.xlane.xlu0 %2411
      %v2413 = vadd.f32 %v2412, %v307
      %v2414 = vxor.u32 %v2413, 2147483648
      %v2415 = vmul.f32 %v2414, 1.442695
      %v2416 = vpow.pop %v2415
      %v2417 = vadd.f32 %v2416, 1.0
      %v2418 = vrcp.pop %v2417
      %v2419 = vmul.f32 %v2417, %v2418
      %v2420 = vsub.f32 1.0, %v2419
      %v2421 = vmul.f32 %v2418, %v2420
      %v2422 = vadd.f32 %v2418, %v2421
      %vm2423 = vweird.f32 %v2417
      %vm2424 = vweird.f32 %v2418
      %vm2425 = vmor %vm2423, %vm2424
      %v2426 = vsel %vm2425, %v2418, %v2422
      %v2427 = vand.u32 2147483647, %v2417
      %vm2428 = vcmp.eq.f32.partialorder %v2427, 8.507059e+37
      %v2429 = vand.u32 %v2417, 2147483648
      %v2430 = vor.u32 1.1754944e-38, %v2429
      %v2431 = vsel %vm2428, %v2430, %v2426
      %v2432 = vmul.f32 1.0, %v2431
      %2434 = vset.pattern.permute.xlu0 32
      %2435 = vperm.xlu0 %2434, %v2432
      %v2436 = vpop.permute.xlu0 %2435
      %2438 = vst [vmem:[%s220] sm:$0x1] %v2436
      %p2439 = scmp.lt.s32.totalorder %s16, 3
      %s2440 = scalar_select %p2439, %s16, 3
      %s2441 = scalar_lea.vmem %s5, %s2440
      // Predicated region
      $region41: #{sa_net_forward.1} parent=39 // pred_check
        %p2442 = pneg %p144
      $region42: #{sa_net_forward.1} parent=39 // pred_check_branch
        %2444 = sbr.rel (%p2442) target = $region44
      $region43: #{sa_net_forward.1} parent=39 // pred_region
        _
      $region44: #{sa_net_forward.1} parent=39 // pred_fallthru
        _
    $region40: #{sa_net_forward.1} parent=5 // pred_fallthru
      _
    %p2445 = scmp.le.s32.totalorder 2, %s11
    // Predicated region
    $region45: #{sa_net_forward.1} parent=5 // pred_check
      %p2446 = pneg %p2445
    $region46: #{sa_net_forward.1} parent=5 // pred_check_branch
      %2448 = sbr.rel (%p2446) target = $region48
    $region47: #{sa_net_forward.1} parent=5 // pred_region
      %s2449 = ssub.s32 %s11, 2
      // Predicated region
      $region49: #{sa_net_forward.1} parent=47 // pred_check
        %p2450 = pneg %p150
      $region50: #{sa_net_forward.1} parent=47 // pred_check_branch
        %2452 = sbr.rel (%p2450) target = $region52
      $region51: #{sa_net_forward.1} parent=47 // pred_region
        %p2453 = scmp.lt.s32.totalorder %s17, 3
        %s2454 = scalar_select %p2453, %s17, 3
        %s2455 = scalar_lea.vmem %s5, %s2454
      $region52: #{sa_net_forward.1} parent=47 // pred_fallthru
        _
    $region48: #{sa_net_forward.1} parent=5 // pred_fallthru
      _
  $region6: #{sa_net_forward.1} parent=0 // loop_footer
    %s15 = sadd.s32 1, %s11
  $region7: #{sa_net_forward.1} parent=0 // loop_footer_branch
    %10 = sbr.rel target = $region3
  $region8: #{sa_net_forward.1} parent=0 // loop_exit
    _

</llo_original>
